<compile_context>
chip_gen: v7x
topology: tpu7x:2x2x1
jax: 0.10.0
libtpu: 0.0.40
codegen_flags: <defaults>
</compile_context>

<pallas_src>
import math
import functools

import jax
import jax.numpy as jnp
from jax.experimental import pallas as pl
from jax.experimental.pallas import tpu as pltpu


# ----------------------------------------------------------------------------
# In-kernel helpers
# ----------------------------------------------------------------------------
def _gelu(v):
    # tanh-approx GELU: one EUP tanh, few VPU ops (perf review).
    c = 0.7978845608028654  # sqrt(2/pi)
    return 0.5 * v * (1.0 + jnp.tanh(c * (v + 0.044715 * v * v * v)))


# ----------------------------------------------------------------------------
# Single fused forward kernel
# ----------------------------------------------------------------------------
def _make_fused_call(T, B, H, n_layers, out_pad, gp):
    H3 = 3 * H
    F = 2 * H                       # flattened (C=1, fs, fs) feature map
    n_gru_args = 3 + (n_layers - 1) * 5

    def kernel(*args):
        x2_ref, wih0_ref, bih0_ref = args[:3]
        pos = 3
        layer_refs = []
        for l in range(n_layers):
            if l == 0:
                layer_refs.append((None, None) + tuple(args[pos:pos + 3]))
                pos += 3
            else:
                layer_refs.append(tuple(args[pos:pos + 5]))
                pos += 5
        sc = args[pos]                                     # SMEM (4,) scalars
        m1_ref, m2_ref, sh1_ref, sh2_ref, fcw_ref, fcb_ref = args[pos + 1:pos + 7]
        out_ref = args[pos + 7]

        def gru_cell(gi, gh, h_prev):
            r = jax.nn.sigmoid(gi[:, :H] + gh[:, :H])
            z = jax.nn.sigmoid(gi[:, H:2 * H] + gh[:, H:2 * H])
            n = jnp.tanh(gi[:, 2 * H:] + r * gh[:, 2 * H:])
            return n + z * (h_prev - n)

        # Layer-0 input projection (Conformer stand-in folded in): one N=256
        # MXU pass covering all T timesteps and both directions, hoisted out
        # of the sequential recurrence.  fwd gates in lanes [0:3H), bwd gates
        # in lanes [gp:gp+3H).  Kept as a register value (~4 vregs).
        gi = (jnp.dot(x2_ref[...], wih0_ref[...], preferred_element_type=jnp.float32)
              + bih0_ref[...])

        outs_f = [None] * T          # forward hidden at original time t
        outs_b = [None] * T          # backward hidden at original time t
        for l, (wih_r, bih_r, whh_r, bhh_f_r, bhh_b_r) in enumerate(layer_refs):
            if l > 0:   # only traced when rnn_layers > 1
                # TODO(synk): if T / rnn_layers grow, stage per-t outputs in a
                # (T, B, 2H) VMEM scratch and drive this with lax.fori_loop.
                x_cat = jnp.concatenate(
                    [jnp.concatenate([outs_f[t], outs_b[t]], axis=-1) for t in range(T)],
                    axis=0).astype(jnp.bfloat16)
                gi = (jnp.dot(x_cat, wih_r[...], preferred_element_type=jnp.float32)
                      + bih_r[...])
            whh = whh_r[...]                                       # (H, 2*gp) bf16
            bhh_f = jnp.broadcast_to(bhh_f_r[...], (B, H3))        # hoisted broadcast
            bhh_b = jnp.broadcast_to(bhh_b_r[...], (B, H3))
            h_f = jnp.zeros((B, H), jnp.float32)
            h_b = jnp.zeros((B, H), jnp.float32)
            for t in range(T):                                     # unrolled (small T)
                rb = T - 1 - t
                # one fused bf16 MXU matmul per step for both directions
                h_comb = jnp.concatenate([h_f, h_b], axis=0).astype(jnp.bfloat16)
                gh = jnp.dot(h_comb, whh, preferred_element_type=jnp.float32)
                gh_f = gh[:B, :H3] + bhh_f
                gh_b = gh[B:, gp:gp + H3] + bhh_b
                gi_f = gi[t * B:(t + 1) * B, :H3]
                gi_b = gi[rb * B:(rb + 1) * B, gp:gp + H3]
                h_f = gru_cell(gi_f, gh_f, h_f)
                h_b = gru_cell(gi_b, gh_b, h_b)
                outs_f[t] = h_f
                outs_b[rb] = h_b

        # rnn_out[-1] = [fwd hidden after last step | bwd hidden at original
        # time T-1], assembled as a register value (no VMEM round-trip).
        x_feat = jnp.concatenate([outs_f[T - 1], outs_b[T - 1]], axis=-1)   # (B, 2H)

        # Rene block: the two flows fused into two 128-wide block-diagonal
        # matmuls; left flow occupies lanes [0:F), right flow lanes [F:2F).
        s1 = jnp.concatenate([_gelu(x_feat * sc[0] + sc[1]), x_feat], axis=-1)
        st1 = (jnp.dot(s1.astype(jnp.bfloat16), m1_ref[...],
                       preferred_element_type=jnp.float32) + sh1_ref[...])
        s2 = _gelu(st1)
        st2 = (jnp.dot(s2.astype(jnp.bfloat16), m2_ref[...],
                       preferred_element_type=jnp.float32) + sh2_ref[...])
        left = st2[:, :F]
        right = _gelu(st2[:, F:]) * sc[2] + sc[3]
        res = left + right + x_feat                                # residual, (B, F)

        out_ref[...] = (jnp.dot(res.astype(jnp.bfloat16), fcw_ref[...],
                                preferred_element_type=jnp.float32) + fcb_ref[...])

    vmem = pl.BlockSpec(memory_space=pltpu.MemorySpace.VMEM)
    smem = pl.BlockSpec(memory_space=pltpu.MemorySpace.SMEM)
    in_specs = [vmem] * (3 + n_gru_args) + [smem] + [vmem] * 6
    return pl.pallas_call(
        kernel,
        out_shape=jax.ShapeDtypeStruct((B, out_pad), jnp.float32),
        in_specs=in_specs,
        out_specs=vmem,
    )


# ----------------------------------------------------------------------------
# Host-side (wrapper) folding helpers
# ----------------------------------------------------------------------------
def _conv_matrix(taps, fs):
    # Dense (fs*fs, fs*fs) matrix M so that out_flat = in_flat @ M equals a
    # 'same'-padded 2-D cross-correlation with `taps` on a single channel.
    k = taps.shape[0]
    pad = k // 2
    idx = jnp.arange(fs)
    d = idx[:, None] - idx[None, :] + pad               # d[i_in, i_out]
    valid = (d >= 0) & (d < k)
    dc = jnp.where(valid, d, 0)
    m = taps[dc[:, None, :, None], dc[None, :, None, :]]          # [ri, ci, r, c]
    mask = valid[:, None, :, None] & valid[None, :, None, :]
    return jnp.where(mask, m, 0.0).reshape(fs * fs, fs * fs)


def _fold_rene(rene, fs, out_pad, out_dim):
    L, R = rene["left"], rene["right"]
    l_bn1_s, l_bn1_h = L["bn1"]
    l_bn2_s, l_bn2_h = L["bn2"]
    r_bn1_s, r_bn1_h = R["bn1"]
    r_bn2_s, r_bn2_h = R["bn2"]
    ff = fs * fs

    # left : 1x1 -> BN1 -> GELU -> (dw3x3 -> pw1x1) -> BN2 -> GELU -> 5x5
    # right: 5x5 -> BN1 -> GELU -> (dw3x3 -> pw1x1) -> BN2 -> GELU -> 1x1
    m3l = _conv_matrix(L["taps3"], fs) * (L["pww"] * l_bn2_s)
    m5l = _conv_matrix(L["taps5"], fs)
    m5r = _conv_matrix(R["taps5"], fs) * r_bn1_s
    m3r = _conv_matrix(R["taps3"], fs) * (R["pww"] * r_bn2_s)

    def blockdiag(a, b):
        out = jnp.zeros((2 * ff, 2 * ff), jnp.float32)
        return out.at[:ff, :ff].set(a).at[ff:, ff:].set(b).astype(jnp.bfloat16)

    m1 = blockdiag(m3l, m5r)          # stage 1: [left dw3+pw+BN2 | right 5x5+BN1]
    m2 = blockdiag(m5l, m3r)          # stage 2: [left 5x5        | right dw3+pw+BN2]

    sc2 = L["dwb"] * L["pww"] * l_bn2_s + L["pwb"] * l_bn2_s + l_bn2_h
    sc3 = L["b5"]
    sc4 = R["b5"] * r_bn1_s + r_bn1_h
    sc5 = R["dwb"] * R["pww"] * r_bn2_s + R["pwb"] * r_bn2_s + r_bn2_h
    sh1 = jnp.concatenate([jnp.broadcast_to(sc2, (1, ff)),
                           jnp.broadcast_to(sc4, (1, ff))], axis=1).astype(jnp.float32)
    sh2 = jnp.concatenate([jnp.broadcast_to(sc3, (1, ff)),
                           jnp.broadcast_to(sc5, (1, ff))], axis=1).astype(jnp.float32)

    sc = jnp.stack([
        jnp.asarray(L["w1"] * l_bn1_s, jnp.float32),                 # 0: left 1x1+BN1 scale
        jnp.asarray(L["b1"] * l_bn1_s + l_bn1_h, jnp.float32),       # 1: left 1x1+BN1 shift
        jnp.asarray(R["w1"], jnp.float32),                           # 2: right final 1x1 scale
        jnp.asarray(R["b1"], jnp.float32),                           # 3: right final 1x1 shift
    ])

    fcw = (jnp.zeros((ff, out_pad), jnp.float32)
           .at[:, :out_dim].set(rene["fc_w"]).astype(jnp.bfloat16))
    fcb = jnp.zeros((1, out_pad), jnp.float32).at[:, :out_dim].set(rene["fc_b"])
    return sc, m1, m2, sh1, sh2, fcw, fcb


# ----------------------------------------------------------------------------
# Parameter construction (deterministic, synthetic)
# ----------------------------------------------------------------------------
def _bn_scale_shift(key, eps=1e-5):
    k1, k2, k3, k4 = jax.random.split(key, 4)
    gamma = 1.0 + 0.1 * jax.random.normal(k1, ())
    beta = 0.1 * jax.random.normal(k2, ())
    rm = 0.1 * jax.random.normal(k3, ())
    rv = 1.0 + 0.1 * jnp.abs(jax.random.normal(k4, ()))
    scale = gamma / jnp.sqrt(rv + eps)
    shift = beta - rm * scale
    return scale, shift


def _make_flow_params(key):
    ks = jax.random.split(key, 10)
    u = lambda k, s=(): jax.random.uniform(k, s, jnp.float32, -0.5, 0.5)
    return dict(
        taps3=u(ks[0], (3, 3)), taps5=u(ks[1], (5, 5)),
        w1=u(ks[2]), b1=u(ks[3]),
        dwb=u(ks[4]), pww=u(ks[5]), pwb=u(ks[6]), b5=u(ks[7]),
        bn1=_bn_scale_shift(ks[8]), bn2=_bn_scale_shift(ks[9]),
    )


def make_params(cfg, key):
    H = cfg["rnn_hid_dim"]
    Din = cfg["whiper_dim"]
    out_dim = cfg["output_dim"]
    keys = jax.random.split(key, 8)

    params = {}
    params["conf_w"] = 0.1 * jax.random.normal(keys[0], (Din, H), jnp.float32)
    params["conf_b"] = 0.1 * jax.random.normal(keys[1], (1, H), jnp.float32)

    bound = 1.0 / math.sqrt(H)
    gru_layers = []
    kk = keys[2]
    for layer in range(cfg["rnn_layers"]):
        in_dim = H if layer == 0 else 2 * H
        dirs = []
        for _ in range(2 if cfg["bidirect"] else 1):
            kk, k1, k2, k3, k4 = jax.random.split(kk, 5)
            dirs.append(dict(
                w_ih_t=jax.random.uniform(k1, (in_dim, 3 * H), jnp.float32, -bound, bound),
                w_hh_t=jax.random.uniform(k2, (H, 3 * H), jnp.float32, -bound, bound),
                b_ih=jax.random.uniform(k3, (1, 3 * H), jnp.float32, -bound, bound),
                b_hh=jax.random.uniform(k4, (1, 3 * H), jnp.float32, -bound, bound),
            ))
        gru_layers.append(dirs)
    params["gru"] = gru_layers

    fb = 1.0 / math.sqrt(2 * H)
    params["rene"] = dict(
        left=_make_flow_params(keys[3]),
        right=_make_flow_params(keys[4]),
        fc_w=jax.random.uniform(keys[5], (2 * H, out_dim), jnp.float32, -fb, fb),
        fc_b=jax.random.uniform(keys[6], (1, out_dim), jnp.float32, -fb, fb),
    )
    return params


# ----------------------------------------------------------------------------
# Model forward (single fused pallas_call)
# ----------------------------------------------------------------------------
def model_forward(cfg, params, x, input_length):
    del input_length  # TODO(synk): used only by the real Conformer for length masking
    B, T, Din = x.shape
    H = cfg["rnn_hid_dim"]
    H3 = 3 * H
    out_dim = cfg["output_dim"]
    fs = int(math.isqrt(2 * H))
    gp = ((H3 + 127) // 128) * 128      # per-direction gate block, lane-aligned
    assert cfg["bidirect"], "ReneTrialBlock input width requires a bidirectional GRU"
    assert cfg["rtb_data_channels"] * fs * fs == 2 * H

    def pad_dir_pair(wf, wb, dtype):
        # [fwd | zeros | bwd | zeros] along the lane axis, per-direction 128-aligned
        out = jnp.zeros((wf.shape[0], 2 * gp), jnp.float32)
        out = out.at[:, :H3].set(wf).at[:, gp:gp + H3].set(wb)
        return out.astype(dtype)

    # GRU layer-0 input weights with the Conformer stand-in projection folded in.
    g0 = params["gru"][0]
    wih0 = pad_dir_pair(params["conf_w"] @ g0[0]["w_ih_t"],
                        params["conf_w"] @ g0[1]["w_ih_t"], jnp.bfloat16)
    bih0 = pad_dir_pair(params["conf_b"] @ g0[0]["w_ih_t"] + g0[0]["b_ih"],
                        params["conf_b"] @ g0[1]["w_ih_t"] + g0[1]["b_ih"], jnp.float32)

    gru_args = []
    for l, dirs in enumerate(params["gru"]):
        if l > 0:
            gru_args.append(pad_dir_pair(dirs[0]["w_ih_t"], dirs[1]["w_ih_t"], jnp.bfloat16))
            gru_args.append(pad_dir_pair(dirs[0]["b_ih"], dirs[1]["b_ih"], jnp.float32))
        gru_args.append(pad_dir_pair(dirs[0]["w_hh_t"], dirs[1]["w_hh_t"], jnp.bfloat16))
        gru_args.append(dirs[0]["b_hh"])
        gru_args.append(dirs[1]["b_hh"])

    out_pad = max(128, ((out_dim + 127) // 128) * 128)   # lane-dense output store
    sc, m1, m2, sh1, sh2, fcw, fcb = _fold_rene(params["rene"], fs, out_pad, out_dim)

    # time-major, flattened to (T*B, Din) so the layer-0 input GEMM is one pass
    x2 = jnp.transpose(x, (1, 0, 2)).reshape(T * B, Din).astype(jnp.bfloat16)

    call = _make_fused_call(T, B, H, len(params["gru"]), out_pad, gp)
    out = call(x2, wih0, bih0, *gru_args, sc, m1, m2, sh1, sh2, fcw, fcb)
    return out[:, :out_dim]


# ----------------------------------------------------------------------------
if __name__ == "__main__":
    cfg = dict(
        whiper_dim=16, encoder_dim=32, num_encoder_layers=1, num_attention_heads=4,
        input_dropout=0.0, feed_forward_dropout=0.0, attention_dropout=0.0,
        conv_dropout=0.0,
        rnn_hid_dim=32, rnn_layers=1, bidirect=True,
        rtb_data_channels=1, output_dim=10,
    )

    key = jax.random.PRNGKey(0)
    kx, kp = jax.random.split(key)
    B, T = 2, 8
    x = jax.random.normal(kx, (B, T, cfg["whiper_dim"]), jnp.float32)
    input_length = jnp.full((B,), T, jnp.int32)

    params = make_params(cfg, kp)
    fwd = jax.jit(functools.partial(model_forward, cfg))
    out = jax.block_until_ready(fwd(params, x, input_length))
    assert out.shape == (B, cfg["output_dim"]), out.shape
    assert bool(jnp.all(jnp.isfinite(out)))
    print("KERNEL_OK")
</pallas_src>

<mosaic_0001>
module attributes {stable_mosaic.version = 11 : i64} {
  func.func @kernel(%arg0: memref<16x16xbf16, #tpu.memory_space<vmem>>, %arg1: memref<16x256xbf16, #tpu.memory_space<vmem>>, %arg2: memref<1x256xf32, #tpu.memory_space<vmem>>, %arg3: memref<32x256xbf16, #tpu.memory_space<vmem>>, %arg4: memref<1x96xf32, #tpu.memory_space<vmem>>, %arg5: memref<1x96xf32, #tpu.memory_space<vmem>>, %arg6: memref<4xf32, #tpu.memory_space<smem>>, %arg7: memref<128x128xbf16, #tpu.memory_space<vmem>>, %arg8: memref<128x128xbf16, #tpu.memory_space<vmem>>, %arg9: memref<1x128xf32, #tpu.memory_space<vmem>>, %arg10: memref<1x128xf32, #tpu.memory_space<vmem>>, %arg11: memref<64x128xbf16, #tpu.memory_space<vmem>>, %arg12: memref<1x128xf32, #tpu.memory_space<vmem>>, %arg13: memref<2x128xf32, #tpu.memory_space<vmem>>) attributes {dimension_semantics = [], scalar_prefetch = 0 : i64, scratch_operands = 0 : i64, tpu.core_type = #tpu.core_type<tc>} {
    %c0 = arith.constant 0 : index
    %c0_0 = arith.constant 0 : index
    %0 = vector.load %arg0[%c0, %c0_0] : memref<16x16xbf16, #tpu.memory_space<vmem>>, vector<16x16xbf16>
    %c0_1 = arith.constant 0 : index
    %c0_2 = arith.constant 0 : index
    %1 = vector.load %arg1[%c0_1, %c0_2] : memref<16x256xbf16, #tpu.memory_space<vmem>>, vector<16x256xbf16>
    %cst = arith.constant dense<0.000000e+00> : vector<16x256xf32>
    %2 = tpu.matmul %0, %1, %cst {dimension_numbers = #tpu.dot_dimension_numbers<[1], [0], [0], [1], [0, 0, 1, 1], [], []>} : vector<16x16xbf16>, vector<16x256xbf16>, vector<16x256xf32> -> vector<16x256xf32>
    %c0_3 = arith.constant 0 : index
    %c0_4 = arith.constant 0 : index
    %3 = vector.load %arg2[%c0_3, %c0_4] : memref<1x256xf32, #tpu.memory_space<vmem>>, vector<1x256xf32>
    %4 = vector.broadcast %3 : vector<1x256xf32> to vector<16x256xf32>
    %5 = arith.addf %2, %4 : vector<16x256xf32>
    %c0_5 = arith.constant 0 : index
    %c0_6 = arith.constant 0 : index
    %6 = vector.load %arg3[%c0_5, %c0_6] : memref<32x256xbf16, #tpu.memory_space<vmem>>, vector<32x256xbf16>
    %c0_7 = arith.constant 0 : index
    %c0_8 = arith.constant 0 : index
    %7 = vector.load %arg4[%c0_7, %c0_8] : memref<1x96xf32, #tpu.memory_space<vmem>>, vector<1x96xf32>
    %8 = vector.shape_cast %7 : vector<1x96xf32> to vector<1x96xf32>
    %9 = vector.broadcast %8 : vector<1x96xf32> to vector<2x96xf32>
    %c0_9 = arith.constant 0 : index
    %c0_10 = arith.constant 0 : index
    %10 = vector.load %arg5[%c0_9, %c0_10] : memref<1x96xf32, #tpu.memory_space<vmem>>, vector<1x96xf32>
    %11 = vector.shape_cast %10 : vector<1x96xf32> to vector<1x96xf32>
    %12 = vector.broadcast %11 : vector<1x96xf32> to vector<2x96xf32>
    %cst_11 = arith.constant 0.000000e+00 : f32
    %13 = vector.broadcast %cst_11 : f32 to vector<2x32xf32>
    %cst_12 = arith.constant 0.000000e+00 : f32
    %14 = vector.broadcast %cst_12 : f32 to vector<2x32xf32>
    %15 = tpu.concatenate %13, %14 in 0 : vector<2x32xf32>, vector<2x32xf32> -> vector<4x32xf32>
    %16 = arith.truncf %15 : vector<4x32xf32> to vector<4x32xbf16>
    %cst_13 = arith.constant dense<0.000000e+00> : vector<4x256xf32>
    %17 = tpu.matmul %16, %6, %cst_13 {dimension_numbers = #tpu.dot_dimension_numbers<[1], [0], [0], [1], [0, 0, 1, 1], [], []>} : vector<4x32xbf16>, vector<32x256xbf16>, vector<4x256xf32> -> vector<4x256xf32>
    %18 = vector.extract_strided_slice %17 {offsets = [0, 0], sizes = [2, 96], strides = [1, 1]} : vector<4x256xf32> to vector<2x96xf32>
    %19 = arith.addf %18, %9 : vector<2x96xf32>
    %20 = vector.extract_strided_slice %17 {offsets = [2, 128], sizes = [2, 96], strides = [1, 1]} : vector<4x256xf32> to vector<2x96xf32>
    %21 = arith.addf %20, %12 : vector<2x96xf32>
    %22 = vector.extract_strided_slice %5 {offsets = [0, 0], sizes = [2, 96], strides = [1, 1]} : vector<16x256xf32> to vector<2x96xf32>
    %23 = vector.extract_strided_slice %5 {offsets = [14, 128], sizes = [2, 96], strides = [1, 1]} : vector<16x256xf32> to vector<2x96xf32>
    %24 = vector.extract_strided_slice %22 {offsets = [0, 0], sizes = [2, 32], strides = [1, 1]} : vector<2x96xf32> to vector<2x32xf32>
    %25 = vector.extract_strided_slice %19 {offsets = [0, 0], sizes = [2, 32], strides = [1, 1]} : vector<2x96xf32> to vector<2x32xf32>
    %26 = arith.addf %24, %25 : vector<2x32xf32>
    %27 = arith.negf %26 : vector<2x32xf32>
    %28 = math.exp %27 : vector<2x32xf32>
    %cst_14 = arith.constant 1.000000e+00 : f32
    %29 = vector.broadcast %cst_14 : f32 to vector<2x32xf32>
    %30 = arith.addf %29, %28 : vector<2x32xf32>
    %31 = arith.divf %29, %30 : vector<2x32xf32>
    %32 = vector.extract_strided_slice %22 {offsets = [0, 32], sizes = [2, 32], strides = [1, 1]} : vector<2x96xf32> to vector<2x32xf32>
    %33 = vector.extract_strided_slice %19 {offsets = [0, 32], sizes = [2, 32], strides = [1, 1]} : vector<2x96xf32> to vector<2x32xf32>
    %34 = arith.addf %32, %33 : vector<2x32xf32>
    %35 = arith.negf %34 : vector<2x32xf32>
    %36 = math.exp %35 : vector<2x32xf32>
    %cst_15 = arith.constant 1.000000e+00 : f32
    %37 = vector.broadcast %cst_15 : f32 to vector<2x32xf32>
    %38 = arith.addf %37, %36 : vector<2x32xf32>
    %39 = arith.divf %37, %38 : vector<2x32xf32>
    %40 = vector.extract_strided_slice %22 {offsets = [0, 64], sizes = [2, 32], strides = [1, 1]} : vector<2x96xf32> to vector<2x32xf32>
    %41 = vector.extract_strided_slice %19 {offsets = [0, 64], sizes = [2, 32], strides = [1, 1]} : vector<2x96xf32> to vector<2x32xf32>
    %42 = arith.mulf %31, %41 : vector<2x32xf32>
    %43 = arith.addf %40, %42 : vector<2x32xf32>
    %44 = math.tanh %43 : vector<2x32xf32>
    %45 = arith.subf %13, %44 : vector<2x32xf32>
    %46 = arith.mulf %39, %45 : vector<2x32xf32>
    %47 = arith.addf %44, %46 : vector<2x32xf32>
    %48 = vector.extract_strided_slice %23 {offsets = [0, 0], sizes = [2, 32], strides = [1, 1]} : vector<2x96xf32> to vector<2x32xf32>
    %49 = vector.extract_strided_slice %21 {offsets = [0, 0], sizes = [2, 32], strides = [1, 1]} : vector<2x96xf32> to vector<2x32xf32>
    %50 = arith.addf %48, %49 : vector<2x32xf32>
    %51 = arith.negf %50 : vector<2x32xf32>
    %52 = math.exp %51 : vector<2x32xf32>
    %cst_16 = arith.constant 1.000000e+00 : f32
    %53 = vector.broadcast %cst_16 : f32 to vector<2x32xf32>
    %54 = arith.addf %53, %52 : vector<2x32xf32>
    %55 = arith.divf %53, %54 : vector<2x32xf32>
    %56 = vector.extract_strided_slice %23 {offsets = [0, 32], sizes = [2, 32], strides = [1, 1]} : vector<2x96xf32> to vector<2x32xf32>
    %57 = vector.extract_strided_slice %21 {offsets = [0, 32], sizes = [2, 32], strides = [1, 1]} : vector<2x96xf32> to vector<2x32xf32>
    %58 = arith.addf %56, %57 : vector<2x32xf32>
    %59 = arith.negf %58 : vector<2x32xf32>
    %60 = math.exp %59 : vector<2x32xf32>
    %cst_17 = arith.constant 1.000000e+00 : f32
    %61 = vector.broadcast %cst_17 : f32 to vector<2x32xf32>
    %62 = arith.addf %61, %60 : vector<2x32xf32>
    %63 = arith.divf %61, %62 : vector<2x32xf32>
    %64 = vector.extract_strided_slice %23 {offsets = [0, 64], sizes = [2, 32], strides = [1, 1]} : vector<2x96xf32> to vector<2x32xf32>
    %65 = vector.extract_strided_slice %21 {offsets = [0, 64], sizes = [2, 32], strides = [1, 1]} : vector<2x96xf32> to vector<2x32xf32>
    %66 = arith.mulf %55, %65 : vector<2x32xf32>
    %67 = arith.addf %64, %66 : vector<2x32xf32>
    %68 = math.tanh %67 : vector<2x32xf32>
    %69 = arith.subf %14, %68 : vector<2x32xf32>
    %70 = arith.mulf %63, %69 : vector<2x32xf32>
    %71 = arith.addf %68, %70 : vector<2x32xf32>
    %72 = tpu.concatenate %47, %71 in 0 : vector<2x32xf32>, vector<2x32xf32> -> vector<4x32xf32>
    %73 = arith.truncf %72 : vector<4x32xf32> to vector<4x32xbf16>
    %cst_18 = arith.constant dense<0.000000e+00> : vector<4x256xf32>
    %74 = tpu.matmul %73, %6, %cst_18 {dimension_numbers = #tpu.dot_dimension_numbers<[1], [0], [0], [1], [0, 0, 1, 1], [], []>} : vector<4x32xbf16>, vector<32x256xbf16>, vector<4x256xf32> -> vector<4x256xf32>
    %75 = vector.extract_strided_slice %74 {offsets = [0, 0], sizes = [2, 96], strides = [1, 1]} : vector<4x256xf32> to vector<2x96xf32>
    %76 = arith.addf %75, %9 : vector<2x96xf32>
    %77 = vector.extract_strided_slice %74 {offsets = [2, 128], sizes = [2, 96], strides = [1, 1]} : vector<4x256xf32> to vector<2x96xf32>
    %78 = arith.addf %77, %12 : vector<2x96xf32>
    %79 = vector.extract_strided_slice %5 {offsets = [2, 0], sizes = [2, 96], strides = [1, 1]} : vector<16x256xf32> to vector<2x96xf32>
    %80 = vector.extract_strided_slice %5 {offsets = [12, 128], sizes = [2, 96], strides = [1, 1]} : vector<16x256xf32> to vector<2x96xf32>
    %81 = vector.extract_strided_slice %79 {offsets = [0, 0], sizes = [2, 32], strides = [1, 1]} : vector<2x96xf32> to vector<2x32xf32>
    %82 = vector.extract_strided_slice %76 {offsets = [0, 0], sizes = [2, 32], strides = [1, 1]} : vector<2x96xf32> to vector<2x32xf32>
    %83 = arith.addf %81, %82 : vector<2x32xf32>
    %84 = arith.negf %83 : vector<2x32xf32>
    %85 = math.exp %84 : vector<2x32xf32>
    %cst_19 = arith.constant 1.000000e+00 : f32
    %86 = vector.broadcast %cst_19 : f32 to vector<2x32xf32>
    %87 = arith.addf %86, %85 : vector<2x32xf32>
    %88 = arith.divf %86, %87 : vector<2x32xf32>
    %89 = vector.extract_strided_slice %79 {offsets = [0, 32], sizes = [2, 32], strides = [1, 1]} : vector<2x96xf32> to vector<2x32xf32>
    %90 = vector.extract_strided_slice %76 {offsets = [0, 32], sizes = [2, 32], strides = [1, 1]} : vector<2x96xf32> to vector<2x32xf32>
    %91 = arith.addf %89, %90 : vector<2x32xf32>
    %92 = arith.negf %91 : vector<2x32xf32>
    %93 = math.exp %92 : vector<2x32xf32>
    %cst_20 = arith.constant 1.000000e+00 : f32
    %94 = vector.broadcast %cst_20 : f32 to vector<2x32xf32>
    %95 = arith.addf %94, %93 : vector<2x32xf32>
    %96 = arith.divf %94, %95 : vector<2x32xf32>
    %97 = vector.extract_strided_slice %79 {offsets = [0, 64], sizes = [2, 32], strides = [1, 1]} : vector<2x96xf32> to vector<2x32xf32>
    %98 = vector.extract_strided_slice %76 {offsets = [0, 64], sizes = [2, 32], strides = [1, 1]} : vector<2x96xf32> to vector<2x32xf32>
    %99 = arith.mulf %88, %98 : vector<2x32xf32>
    %100 = arith.addf %97, %99 : vector<2x32xf32>
    %101 = math.tanh %100 : vector<2x32xf32>
    %102 = arith.subf %47, %101 : vector<2x32xf32>
    %103 = arith.mulf %96, %102 : vector<2x32xf32>
    %104 = arith.addf %101, %103 : vector<2x32xf32>
    %105 = vector.extract_strided_slice %80 {offsets = [0, 0], sizes = [2, 32], strides = [1, 1]} : vector<2x96xf32> to vector<2x32xf32>
    %106 = vector.extract_strided_slice %78 {offsets = [0, 0], sizes = [2, 32], strides = [1, 1]} : vector<2x96xf32> to vector<2x32xf32>
    %107 = arith.addf %105, %106 : vector<2x32xf32>
    %108 = arith.negf %107 : vector<2x32xf32>
    %109 = math.exp %108 : vector<2x32xf32>
    %cst_21 = arith.constant 1.000000e+00 : f32
    %110 = vector.broadcast %cst_21 : f32 to vector<2x32xf32>
    %111 = arith.addf %110, %109 : vector<2x32xf32>
    %112 = arith.divf %110, %111 : vector<2x32xf32>
    %113 = vector.extract_strided_slice %80 {offsets = [0, 32], sizes = [2, 32], strides = [1, 1]} : vector<2x96xf32> to vector<2x32xf32>
    %114 = vector.extract_strided_slice %78 {offsets = [0, 32], sizes = [2, 32], strides = [1, 1]} : vector<2x96xf32> to vector<2x32xf32>
    %115 = arith.addf %113, %114 : vector<2x32xf32>
    %116 = arith.negf %115 : vector<2x32xf32>
    %117 = math.exp %116 : vector<2x32xf32>
    %cst_22 = arith.constant 1.000000e+00 : f32
    %118 = vector.broadcast %cst_22 : f32 to vector<2x32xf32>
    %119 = arith.addf %118, %117 : vector<2x32xf32>
    %120 = arith.divf %118, %119 : vector<2x32xf32>
    %121 = vector.extract_strided_slice %80 {offsets = [0, 64], sizes = [2, 32], strides = [1, 1]} : vector<2x96xf32> to vector<2x32xf32>
    %122 = vector.extract_strided_slice %78 {offsets = [0, 64], sizes = [2, 32], strides = [1, 1]} : vector<2x96xf32> to vector<2x32xf32>
    %123 = arith.mulf %112, %122 : vector<2x32xf32>
    %124 = arith.addf %121, %123 : vector<2x32xf32>
    %125 = math.tanh %124 : vector<2x32xf32>
    %126 = arith.subf %71, %125 : vector<2x32xf32>
    %127 = arith.mulf %120, %126 : vector<2x32xf32>
    %128 = arith.addf %125, %127 : vector<2x32xf32>
    %129 = tpu.concatenate %104, %128 in 0 : vector<2x32xf32>, vector<2x32xf32> -> vector<4x32xf32>
    %130 = arith.truncf %129 : vector<4x32xf32> to vector<4x32xbf16>
    %cst_23 = arith.constant dense<0.000000e+00> : vector<4x256xf32>
    %131 = tpu.matmul %130, %6, %cst_23 {dimension_numbers = #tpu.dot_dimension_numbers<[1], [0], [0], [1], [0, 0, 1, 1], [], []>} : vector<4x32xbf16>, vector<32x256xbf16>, vector<4x256xf32> -> vector<4x256xf32>
    %132 = vector.extract_strided_slice %131 {offsets = [0, 0], sizes = [2, 96], strides = [1, 1]} : vector<4x256xf32> to vector<2x96xf32>
    %133 = arith.addf %132, %9 : vector<2x96xf32>
    %134 = vector.extract_strided_slice %131 {offsets = [2, 128], sizes = [2, 96], strides = [1, 1]} : vector<4x256xf32> to vector<2x96xf32>
    %135 = arith.addf %134, %12 : vector<2x96xf32>
    %136 = vector.extract_strided_slice %5 {offsets = [4, 0], sizes = [2, 96], strides = [1, 1]} : vector<16x256xf32> to vector<2x96xf32>
    %137 = vector.extract_strided_slice %5 {offsets = [10, 128], sizes = [2, 96], strides = [1, 1]} : vector<16x256xf32> to vector<2x96xf32>
    %138 = vector.extract_strided_slice %136 {offsets = [0, 0], sizes = [2, 32], strides = [1, 1]} : vector<2x96xf32> to vector<2x32xf32>
    %139 = vector.extract_strided_slice %133 {offsets = [0, 0], sizes = [2, 32], strides = [1, 1]} : vector<2x96xf32> to vector<2x32xf32>
    %140 = arith.addf %138, %139 : vector<2x32xf32>
    %141 = arith.negf %140 : vector<2x32xf32>
    %142 = math.exp %141 : vector<2x32xf32>
    %cst_24 = arith.constant 1.000000e+00 : f32
    %143 = vector.broadcast %cst_24 : f32 to vector<2x32xf32>
    %144 = arith.addf %143, %142 : vector<2x32xf32>
    %145 = arith.divf %143, %144 : vector<2x32xf32>
    %146 = vector.extract_strided_slice %136 {offsets = [0, 32], sizes = [2, 32], strides = [1, 1]} : vector<2x96xf32> to vector<2x32xf32>
    %147 = vector.extract_strided_slice %133 {offsets = [0, 32], sizes = [2, 32], strides = [1, 1]} : vector<2x96xf32> to vector<2x32xf32>
    %148 = arith.addf %146, %147 : vector<2x32xf32>
    %149 = arith.negf %148 : vector<2x32xf32>
    %150 = math.exp %149 : vector<2x32xf32>
    %cst_25 = arith.constant 1.000000e+00 : f32
    %151 = vector.broadcast %cst_25 : f32 to vector<2x32xf32>
    %152 = arith.addf %151, %150 : vector<2x32xf32>
    %153 = arith.divf %151, %152 : vector<2x32xf32>
    %154 = vector.extract_strided_slice %136 {offsets = [0, 64], sizes = [2, 32], strides = [1, 1]} : vector<2x96xf32> to vector<2x32xf32>
    %155 = vector.extract_strided_slice %133 {offsets = [0, 64], sizes = [2, 32], strides = [1, 1]} : vector<2x96xf32> to vector<2x32xf32>
    %156 = arith.mulf %145, %155 : vector<2x32xf32>
    %157 = arith.addf %154, %156 : vector<2x32xf32>
    %158 = math.tanh %157 : vector<2x32xf32>
    %159 = arith.subf %104, %158 : vector<2x32xf32>
    %160 = arith.mulf %153, %159 : vector<2x32xf32>
    %161 = arith.addf %158, %160 : vector<2x32xf32>
    %162 = vector.extract_strided_slice %137 {offsets = [0, 0], sizes = [2, 32], strides = [1, 1]} : vector<2x96xf32> to vector<2x32xf32>
    %163 = vector.extract_strided_slice %135 {offsets = [0, 0], sizes = [2, 32], strides = [1, 1]} : vector<2x96xf32> to vector<2x32xf32>
    %164 = arith.addf %162, %163 : vector<2x32xf32>
    %165 = arith.negf %164 : vector<2x32xf32>
    %166 = math.exp %165 : vector<2x32xf32>
    %cst_26 = arith.constant 1.000000e+00 : f32
    %167 = vector.broadcast %cst_26 : f32 to vector<2x32xf32>
    %168 = arith.addf %167, %166 : vector<2x32xf32>
    %169 = arith.divf %167, %168 : vector<2x32xf32>
    %170 = vector.extract_strided_slice %137 {offsets = [0, 32], sizes = [2, 32], strides = [1, 1]} : vector<2x96xf32> to vector<2x32xf32>
    %171 = vector.extract_strided_slice %135 {offsets = [0, 32], sizes = [2, 32], strides = [1, 1]} : vector<2x96xf32> to vector<2x32xf32>
    %172 = arith.addf %170, %171 : vector<2x32xf32>
    %173 = arith.negf %172 : vector<2x32xf32>
    %174 = math.exp %173 : vector<2x32xf32>
    %cst_27 = arith.constant 1.000000e+00 : f32
    %175 = vector.broadcast %cst_27 : f32 to vector<2x32xf32>
    %176 = arith.addf %175, %174 : vector<2x32xf32>
    %177 = arith.divf %175, %176 : vector<2x32xf32>
    %178 = vector.extract_strided_slice %137 {offsets = [0, 64], sizes = [2, 32], strides = [1, 1]} : vector<2x96xf32> to vector<2x32xf32>
    %179 = vector.extract_strided_slice %135 {offsets = [0, 64], sizes = [2, 32], strides = [1, 1]} : vector<2x96xf32> to vector<2x32xf32>
    %180 = arith.mulf %169, %179 : vector<2x32xf32>
    %181 = arith.addf %178, %180 : vector<2x32xf32>
    %182 = math.tanh %181 : vector<2x32xf32>
    %183 = arith.subf %128, %182 : vector<2x32xf32>
    %184 = arith.mulf %177, %183 : vector<2x32xf32>
    %185 = arith.addf %182, %184 : vector<2x32xf32>
    %186 = tpu.concatenate %161, %185 in 0 : vector<2x32xf32>, vector<2x32xf32> -> vector<4x32xf32>
    %187 = arith.truncf %186 : vector<4x32xf32> to vector<4x32xbf16>
    %cst_28 = arith.constant dense<0.000000e+00> : vector<4x256xf32>
    %188 = tpu.matmul %187, %6, %cst_28 {dimension_numbers = #tpu.dot_dimension_numbers<[1], [0], [0], [1], [0, 0, 1, 1], [], []>} : vector<4x32xbf16>, vector<32x256xbf16>, vector<4x256xf32> -> vector<4x256xf32>
    %189 = vector.extract_strided_slice %188 {offsets = [0, 0], sizes = [2, 96], strides = [1, 1]} : vector<4x256xf32> to vector<2x96xf32>
    %190 = arith.addf %189, %9 : vector<2x96xf32>
    %191 = vector.extract_strided_slice %188 {offsets = [2, 128], sizes = [2, 96], strides = [1, 1]} : vector<4x256xf32> to vector<2x96xf32>
    %192 = arith.addf %191, %12 : vector<2x96xf32>
    %193 = vector.extract_strided_slice %5 {offsets = [6, 0], sizes = [2, 96], strides = [1, 1]} : vector<16x256xf32> to vector<2x96xf32>
    %194 = vector.extract_strided_slice %5 {offsets = [8, 128], sizes = [2, 96], strides = [1, 1]} : vector<16x256xf32> to vector<2x96xf32>
    %195 = vector.extract_strided_slice %193 {offsets = [0, 0], sizes = [2, 32], strides = [1, 1]} : vector<2x96xf32> to vector<2x32xf32>
    %196 = vector.extract_strided_slice %190 {offsets = [0, 0], sizes = [2, 32], strides = [1, 1]} : vector<2x96xf32> to vector<2x32xf32>
    %197 = arith.addf %195, %196 : vector<2x32xf32>
    %198 = arith.negf %197 : vector<2x32xf32>
    %199 = math.exp %198 : vector<2x32xf32>
    %cst_29 = arith.constant 1.000000e+00 : f32
    %200 = vector.broadcast %cst_29 : f32 to vector<2x32xf32>
    %201 = arith.addf %200, %199 : vector<2x32xf32>
    %202 = arith.divf %200, %201 : vector<2x32xf32>
    %203 = vector.extract_strided_slice %193 {offsets = [0, 32], sizes = [2, 32], strides = [1, 1]} : vector<2x96xf32> to vector<2x32xf32>
    %204 = vector.extract_strided_slice %190 {offsets = [0, 32], sizes = [2, 32], strides = [1, 1]} : vector<2x96xf32> to vector<2x32xf32>
    %205 = arith.addf %203, %204 : vector<2x32xf32>
    %206 = arith.negf %205 : vector<2x32xf32>
    %207 = math.exp %206 : vector<2x32xf32>
    %cst_30 = arith.constant 1.000000e+00 : f32
    %208 = vector.broadcast %cst_30 : f32 to vector<2x32xf32>
    %209 = arith.addf %208, %207 : vector<2x32xf32>
    %210 = arith.divf %208, %209 : vector<2x32xf32>
    %211 = vector.extract_strided_slice %193 {offsets = [0, 64], sizes = [2, 32], strides = [1, 1]} : vector<2x96xf32> to vector<2x32xf32>
    %212 = vector.extract_strided_slice %190 {offsets = [0, 64], sizes = [2, 32], strides = [1, 1]} : vector<2x96xf32> to vector<2x32xf32>
    %213 = arith.mulf %202, %212 : vector<2x32xf32>
    %214 = arith.addf %211, %213 : vector<2x32xf32>
    %215 = math.tanh %214 : vector<2x32xf32>
    %216 = arith.subf %161, %215 : vector<2x32xf32>
    %217 = arith.mulf %210, %216 : vector<2x32xf32>
    %218 = arith.addf %215, %217 : vector<2x32xf32>
    %219 = vector.extract_strided_slice %194 {offsets = [0, 0], sizes = [2, 32], strides = [1, 1]} : vector<2x96xf32> to vector<2x32xf32>
    %220 = vector.extract_strided_slice %192 {offsets = [0, 0], sizes = [2, 32], strides = [1, 1]} : vector<2x96xf32> to vector<2x32xf32>
    %221 = arith.addf %219, %220 : vector<2x32xf32>
    %222 = arith.negf %221 : vector<2x32xf32>
    %223 = math.exp %222 : vector<2x32xf32>
    %cst_31 = arith.constant 1.000000e+00 : f32
    %224 = vector.broadcast %cst_31 : f32 to vector<2x32xf32>
    %225 = arith.addf %224, %223 : vector<2x32xf32>
    %226 = arith.divf %224, %225 : vector<2x32xf32>
    %227 = vector.extract_strided_slice %194 {offsets = [0, 32], sizes = [2, 32], strides = [1, 1]} : vector<2x96xf32> to vector<2x32xf32>
    %228 = vector.extract_strided_slice %192 {offsets = [0, 32], sizes = [2, 32], strides = [1, 1]} : vector<2x96xf32> to vector<2x32xf32>
    %229 = arith.addf %227, %228 : vector<2x32xf32>
    %230 = arith.negf %229 : vector<2x32xf32>
    %231 = math.exp %230 : vector<2x32xf32>
    %cst_32 = arith.constant 1.000000e+00 : f32
    %232 = vector.broadcast %cst_32 : f32 to vector<2x32xf32>
    %233 = arith.addf %232, %231 : vector<2x32xf32>
    %234 = arith.divf %232, %233 : vector<2x32xf32>
    %235 = vector.extract_strided_slice %194 {offsets = [0, 64], sizes = [2, 32], strides = [1, 1]} : vector<2x96xf32> to vector<2x32xf32>
    %236 = vector.extract_strided_slice %192 {offsets = [0, 64], sizes = [2, 32], strides = [1, 1]} : vector<2x96xf32> to vector<2x32xf32>
    %237 = arith.mulf %226, %236 : vector<2x32xf32>
    %238 = arith.addf %235, %237 : vector<2x32xf32>
    %239 = math.tanh %238 : vector<2x32xf32>
    %240 = arith.subf %185, %239 : vector<2x32xf32>
    %241 = arith.mulf %234, %240 : vector<2x32xf32>
    %242 = arith.addf %239, %241 : vector<2x32xf32>
    %243 = tpu.concatenate %218, %242 in 0 : vector<2x32xf32>, vector<2x32xf32> -> vector<4x32xf32>
    %244 = arith.truncf %243 : vector<4x32xf32> to vector<4x32xbf16>
    %cst_33 = arith.constant dense<0.000000e+00> : vector<4x256xf32>
    %245 = tpu.matmul %244, %6, %cst_33 {dimension_numbers = #tpu.dot_dimension_numbers<[1], [0], [0], [1], [0, 0, 1, 1], [], []>} : vector<4x32xbf16>, vector<32x256xbf16>, vector<4x256xf32> -> vector<4x256xf32>
    %246 = vector.extract_strided_slice %245 {offsets = [0, 0], sizes = [2, 96], strides = [1, 1]} : vector<4x256xf32> to vector<2x96xf32>
    %247 = arith.addf %246, %9 : vector<2x96xf32>
    %248 = vector.extract_strided_slice %245 {offsets = [2, 128], sizes = [2, 96], strides = [1, 1]} : vector<4x256xf32> to vector<2x96xf32>
    %249 = arith.addf %248, %12 : vector<2x96xf32>
    %250 = vector.extract_strided_slice %5 {offsets = [8, 0], sizes = [2, 96], strides = [1, 1]} : vector<16x256xf32> to vector<2x96xf32>
    %251 = vector.extract_strided_slice %5 {offsets = [6, 128], sizes = [2, 96], strides = [1, 1]} : vector<16x256xf32> to vector<2x96xf32>
    %252 = vector.extract_strided_slice %250 {offsets = [0, 0], sizes = [2, 32], strides = [1, 1]} : vector<2x96xf32> to vector<2x32xf32>
    %253 = vector.extract_strided_slice %247 {offsets = [0, 0], sizes = [2, 32], strides = [1, 1]} : vector<2x96xf32> to vector<2x32xf32>
    %254 = arith.addf %252, %253 : vector<2x32xf32>
    %255 = arith.negf %254 : vector<2x32xf32>
    %256 = math.exp %255 : vector<2x32xf32>
    %cst_34 = arith.constant 1.000000e+00 : f32
    %257 = vector.broadcast %cst_34 : f32 to vector<2x32xf32>
    %258 = arith.addf %257, %256 : vector<2x32xf32>
    %259 = arith.divf %257, %258 : vector<2x32xf32>
    %260 = vector.extract_strided_slice %250 {offsets = [0, 32], sizes = [2, 32], strides = [1, 1]} : vector<2x96xf32> to vector<2x32xf32>
    %261 = vector.extract_strided_slice %247 {offsets = [0, 32], sizes = [2, 32], strides = [1, 1]} : vector<2x96xf32> to vector<2x32xf32>
    %262 = arith.addf %260, %261 : vector<2x32xf32>
    %263 = arith.negf %262 : vector<2x32xf32>
    %264 = math.exp %263 : vector<2x32xf32>
    %cst_35 = arith.constant 1.000000e+00 : f32
    %265 = vector.broadcast %cst_35 : f32 to vector<2x32xf32>
    %266 = arith.addf %265, %264 : vector<2x32xf32>
    %267 = arith.divf %265, %266 : vector<2x32xf32>
    %268 = vector.extract_strided_slice %250 {offsets = [0, 64], sizes = [2, 32], strides = [1, 1]} : vector<2x96xf32> to vector<2x32xf32>
    %269 = vector.extract_strided_slice %247 {offsets = [0, 64], sizes = [2, 32], strides = [1, 1]} : vector<2x96xf32> to vector<2x32xf32>
    %270 = arith.mulf %259, %269 : vector<2x32xf32>
    %271 = arith.addf %268, %270 : vector<2x32xf32>
    %272 = math.tanh %271 : vector<2x32xf32>
    %273 = arith.subf %218, %272 : vector<2x32xf32>
    %274 = arith.mulf %267, %273 : vector<2x32xf32>
    %275 = arith.addf %272, %274 : vector<2x32xf32>
    %276 = vector.extract_strided_slice %251 {offsets = [0, 0], sizes = [2, 32], strides = [1, 1]} : vector<2x96xf32> to vector<2x32xf32>
    %277 = vector.extract_strided_slice %249 {offsets = [0, 0], sizes = [2, 32], strides = [1, 1]} : vector<2x96xf32> to vector<2x32xf32>
    %278 = arith.addf %276, %277 : vector<2x32xf32>
    %279 = arith.negf %278 : vector<2x32xf32>
    %280 = math.exp %279 : vector<2x32xf32>
    %cst_36 = arith.constant 1.000000e+00 : f32
    %281 = vector.broadcast %cst_36 : f32 to vector<2x32xf32>
    %282 = arith.addf %281, %280 : vector<2x32xf32>
    %283 = arith.divf %281, %282 : vector<2x32xf32>
    %284 = vector.extract_strided_slice %251 {offsets = [0, 32], sizes = [2, 32], strides = [1, 1]} : vector<2x96xf32> to vector<2x32xf32>
    %285 = vector.extract_strided_slice %249 {offsets = [0, 32], sizes = [2, 32], strides = [1, 1]} : vector<2x96xf32> to vector<2x32xf32>
    %286 = arith.addf %284, %285 : vector<2x32xf32>
    %287 = arith.negf %286 : vector<2x32xf32>
    %288 = math.exp %287 : vector<2x32xf32>
    %cst_37 = arith.constant 1.000000e+00 : f32
    %289 = vector.broadcast %cst_37 : f32 to vector<2x32xf32>
    %290 = arith.addf %289, %288 : vector<2x32xf32>
    %291 = arith.divf %289, %290 : vector<2x32xf32>
    %292 = vector.extract_strided_slice %251 {offsets = [0, 64], sizes = [2, 32], strides = [1, 1]} : vector<2x96xf32> to vector<2x32xf32>
    %293 = vector.extract_strided_slice %249 {offsets = [0, 64], sizes = [2, 32], strides = [1, 1]} : vector<2x96xf32> to vector<2x32xf32>
    %294 = arith.mulf %283, %293 : vector<2x32xf32>
    %295 = arith.addf %292, %294 : vector<2x32xf32>
    %296 = math.tanh %295 : vector<2x32xf32>
    %297 = arith.subf %242, %296 : vector<2x32xf32>
    %298 = arith.mulf %291, %297 : vector<2x32xf32>
    %299 = arith.addf %296, %298 : vector<2x32xf32>
    %300 = tpu.concatenate %275, %299 in 0 : vector<2x32xf32>, vector<2x32xf32> -> vector<4x32xf32>
    %301 = arith.truncf %300 : vector<4x32xf32> to vector<4x32xbf16>
    %cst_38 = arith.constant dense<0.000000e+00> : vector<4x256xf32>
    %302 = tpu.matmul %301, %6, %cst_38 {dimension_numbers = #tpu.dot_dimension_numbers<[1], [0], [0], [1], [0, 0, 1, 1], [], []>} : vector<4x32xbf16>, vector<32x256xbf16>, vector<4x256xf32> -> vector<4x256xf32>
    %303 = vector.extract_strided_slice %302 {offsets = [0, 0], sizes = [2, 96], strides = [1, 1]} : vector<4x256xf32> to vector<2x96xf32>
    %304 = arith.addf %303, %9 : vector<2x96xf32>
    %305 = vector.extract_strided_slice %302 {offsets = [2, 128], sizes = [2, 96], strides = [1, 1]} : vector<4x256xf32> to vector<2x96xf32>
    %306 = arith.addf %305, %12 : vector<2x96xf32>
    %307 = vector.extract_strided_slice %5 {offsets = [10, 0], sizes = [2, 96], strides = [1, 1]} : vector<16x256xf32> to vector<2x96xf32>
    %308 = vector.extract_strided_slice %5 {offsets = [4, 128], sizes = [2, 96], strides = [1, 1]} : vector<16x256xf32> to vector<2x96xf32>
    %309 = vector.extract_strided_slice %307 {offsets = [0, 0], sizes = [2, 32], strides = [1, 1]} : vector<2x96xf32> to vector<2x32xf32>
    %310 = vector.extract_strided_slice %304 {offsets = [0, 0], sizes = [2, 32], strides = [1, 1]} : vector<2x96xf32> to vector<2x32xf32>
    %311 = arith.addf %309, %310 : vector<2x32xf32>
    %312 = arith.negf %311 : vector<2x32xf32>
    %313 = math.exp %312 : vector<2x32xf32>
    %cst_39 = arith.constant 1.000000e+00 : f32
    %314 = vector.broadcast %cst_39 : f32 to vector<2x32xf32>
    %315 = arith.addf %314, %313 : vector<2x32xf32>
    %316 = arith.divf %314, %315 : vector<2x32xf32>
    %317 = vector.extract_strided_slice %307 {offsets = [0, 32], sizes = [2, 32], strides = [1, 1]} : vector<2x96xf32> to vector<2x32xf32>
    %318 = vector.extract_strided_slice %304 {offsets = [0, 32], sizes = [2, 32], strides = [1, 1]} : vector<2x96xf32> to vector<2x32xf32>
    %319 = arith.addf %317, %318 : vector<2x32xf32>
    %320 = arith.negf %319 : vector<2x32xf32>
    %321 = math.exp %320 : vector<2x32xf32>
    %cst_40 = arith.constant 1.000000e+00 : f32
    %322 = vector.broadcast %cst_40 : f32 to vector<2x32xf32>
    %323 = arith.addf %322, %321 : vector<2x32xf32>
    %324 = arith.divf %322, %323 : vector<2x32xf32>
    %325 = vector.extract_strided_slice %307 {offsets = [0, 64], sizes = [2, 32], strides = [1, 1]} : vector<2x96xf32> to vector<2x32xf32>
    %326 = vector.extract_strided_slice %304 {offsets = [0, 64], sizes = [2, 32], strides = [1, 1]} : vector<2x96xf32> to vector<2x32xf32>
    %327 = arith.mulf %316, %326 : vector<2x32xf32>
    %328 = arith.addf %325, %327 : vector<2x32xf32>
    %329 = math.tanh %328 : vector<2x32xf32>
    %330 = arith.subf %275, %329 : vector<2x32xf32>
    %331 = arith.mulf %324, %330 : vector<2x32xf32>
    %332 = arith.addf %329, %331 : vector<2x32xf32>
    %333 = vector.extract_strided_slice %308 {offsets = [0, 0], sizes = [2, 32], strides = [1, 1]} : vector<2x96xf32> to vector<2x32xf32>
    %334 = vector.extract_strided_slice %306 {offsets = [0, 0], sizes = [2, 32], strides = [1, 1]} : vector<2x96xf32> to vector<2x32xf32>
    %335 = arith.addf %333, %334 : vector<2x32xf32>
    %336 = arith.negf %335 : vector<2x32xf32>
    %337 = math.exp %336 : vector<2x32xf32>
    %cst_41 = arith.constant 1.000000e+00 : f32
    %338 = vector.broadcast %cst_41 : f32 to vector<2x32xf32>
    %339 = arith.addf %338, %337 : vector<2x32xf32>
    %340 = arith.divf %338, %339 : vector<2x32xf32>
    %341 = vector.extract_strided_slice %308 {offsets = [0, 32], sizes = [2, 32], strides = [1, 1]} : vector<2x96xf32> to vector<2x32xf32>
    %342 = vector.extract_strided_slice %306 {offsets = [0, 32], sizes = [2, 32], strides = [1, 1]} : vector<2x96xf32> to vector<2x32xf32>
    %343 = arith.addf %341, %342 : vector<2x32xf32>
    %344 = arith.negf %343 : vector<2x32xf32>
    %345 = math.exp %344 : vector<2x32xf32>
    %cst_42 = arith.constant 1.000000e+00 : f32
    %346 = vector.broadcast %cst_42 : f32 to vector<2x32xf32>
    %347 = arith.addf %346, %345 : vector<2x32xf32>
    %348 = arith.divf %346, %347 : vector<2x32xf32>
    %349 = vector.extract_strided_slice %308 {offsets = [0, 64], sizes = [2, 32], strides = [1, 1]} : vector<2x96xf32> to vector<2x32xf32>
    %350 = vector.extract_strided_slice %306 {offsets = [0, 64], sizes = [2, 32], strides = [1, 1]} : vector<2x96xf32> to vector<2x32xf32>
    %351 = arith.mulf %340, %350 : vector<2x32xf32>
    %352 = arith.addf %349, %351 : vector<2x32xf32>
    %353 = math.tanh %352 : vector<2x32xf32>
    %354 = arith.subf %299, %353 : vector<2x32xf32>
    %355 = arith.mulf %348, %354 : vector<2x32xf32>
    %356 = arith.addf %353, %355 : vector<2x32xf32>
    %357 = tpu.concatenate %332, %356 in 0 : vector<2x32xf32>, vector<2x32xf32> -> vector<4x32xf32>
    %358 = arith.truncf %357 : vector<4x32xf32> to vector<4x32xbf16>
    %cst_43 = arith.constant dense<0.000000e+00> : vector<4x256xf32>
    %359 = tpu.matmul %358, %6, %cst_43 {dimension_numbers = #tpu.dot_dimension_numbers<[1], [0], [0], [1], [0, 0, 1, 1], [], []>} : vector<4x32xbf16>, vector<32x256xbf16>, vector<4x256xf32> -> vector<4x256xf32>
    %360 = vector.extract_strided_slice %359 {offsets = [0, 0], sizes = [2, 96], strides = [1, 1]} : vector<4x256xf32> to vector<2x96xf32>
    %361 = arith.addf %360, %9 : vector<2x96xf32>
    %362 = vector.extract_strided_slice %359 {offsets = [2, 128], sizes = [2, 96], strides = [1, 1]} : vector<4x256xf32> to vector<2x96xf32>
    %363 = arith.addf %362, %12 : vector<2x96xf32>
    %364 = vector.extract_strided_slice %5 {offsets = [12, 0], sizes = [2, 96], strides = [1, 1]} : vector<16x256xf32> to vector<2x96xf32>
    %365 = vector.extract_strided_slice %5 {offsets = [2, 128], sizes = [2, 96], strides = [1, 1]} : vector<16x256xf32> to vector<2x96xf32>
    %366 = vector.extract_strided_slice %364 {offsets = [0, 0], sizes = [2, 32], strides = [1, 1]} : vector<2x96xf32> to vector<2x32xf32>
    %367 = vector.extract_strided_slice %361 {offsets = [0, 0], sizes = [2, 32], strides = [1, 1]} : vector<2x96xf32> to vector<2x32xf32>
    %368 = arith.addf %366, %367 : vector<2x32xf32>
    %369 = arith.negf %368 : vector<2x32xf32>
    %370 = math.exp %369 : vector<2x32xf32>
    %cst_44 = arith.constant 1.000000e+00 : f32
    %371 = vector.broadcast %cst_44 : f32 to vector<2x32xf32>
    %372 = arith.addf %371, %370 : vector<2x32xf32>
    %373 = arith.divf %371, %372 : vector<2x32xf32>
    %374 = vector.extract_strided_slice %364 {offsets = [0, 32], sizes = [2, 32], strides = [1, 1]} : vector<2x96xf32> to vector<2x32xf32>
    %375 = vector.extract_strided_slice %361 {offsets = [0, 32], sizes = [2, 32], strides = [1, 1]} : vector<2x96xf32> to vector<2x32xf32>
    %376 = arith.addf %374, %375 : vector<2x32xf32>
    %377 = arith.negf %376 : vector<2x32xf32>
    %378 = math.exp %377 : vector<2x32xf32>
    %cst_45 = arith.constant 1.000000e+00 : f32
    %379 = vector.broadcast %cst_45 : f32 to vector<2x32xf32>
    %380 = arith.addf %379, %378 : vector<2x32xf32>
    %381 = arith.divf %379, %380 : vector<2x32xf32>
    %382 = vector.extract_strided_slice %364 {offsets = [0, 64], sizes = [2, 32], strides = [1, 1]} : vector<2x96xf32> to vector<2x32xf32>
    %383 = vector.extract_strided_slice %361 {offsets = [0, 64], sizes = [2, 32], strides = [1, 1]} : vector<2x96xf32> to vector<2x32xf32>
    %384 = arith.mulf %373, %383 : vector<2x32xf32>
    %385 = arith.addf %382, %384 : vector<2x32xf32>
    %386 = math.tanh %385 : vector<2x32xf32>
    %387 = arith.subf %332, %386 : vector<2x32xf32>
    %388 = arith.mulf %381, %387 : vector<2x32xf32>
    %389 = arith.addf %386, %388 : vector<2x32xf32>
    %390 = vector.extract_strided_slice %365 {offsets = [0, 0], sizes = [2, 32], strides = [1, 1]} : vector<2x96xf32> to vector<2x32xf32>
    %391 = vector.extract_strided_slice %363 {offsets = [0, 0], sizes = [2, 32], strides = [1, 1]} : vector<2x96xf32> to vector<2x32xf32>
    %392 = arith.addf %390, %391 : vector<2x32xf32>
    %393 = arith.negf %392 : vector<2x32xf32>
    %394 = math.exp %393 : vector<2x32xf32>
    %cst_46 = arith.constant 1.000000e+00 : f32
    %395 = vector.broadcast %cst_46 : f32 to vector<2x32xf32>
    %396 = arith.addf %395, %394 : vector<2x32xf32>
    %397 = arith.divf %395, %396 : vector<2x32xf32>
    %398 = vector.extract_strided_slice %365 {offsets = [0, 32], sizes = [2, 32], strides = [1, 1]} : vector<2x96xf32> to vector<2x32xf32>
    %399 = vector.extract_strided_slice %363 {offsets = [0, 32], sizes = [2, 32], strides = [1, 1]} : vector<2x96xf32> to vector<2x32xf32>
    %400 = arith.addf %398, %399 : vector<2x32xf32>
    %401 = arith.negf %400 : vector<2x32xf32>
    %402 = math.exp %401 : vector<2x32xf32>
    %cst_47 = arith.constant 1.000000e+00 : f32
    %403 = vector.broadcast %cst_47 : f32 to vector<2x32xf32>
    %404 = arith.addf %403, %402 : vector<2x32xf32>
    %405 = arith.divf %403, %404 : vector<2x32xf32>
    %406 = vector.extract_strided_slice %365 {offsets = [0, 64], sizes = [2, 32], strides = [1, 1]} : vector<2x96xf32> to vector<2x32xf32>
    %407 = vector.extract_strided_slice %363 {offsets = [0, 64], sizes = [2, 32], strides = [1, 1]} : vector<2x96xf32> to vector<2x32xf32>
    %408 = arith.mulf %397, %407 : vector<2x32xf32>
    %409 = arith.addf %406, %408 : vector<2x32xf32>
    %410 = math.tanh %409 : vector<2x32xf32>
    %411 = arith.subf %356, %410 : vector<2x32xf32>
    %412 = arith.mulf %405, %411 : vector<2x32xf32>
    %413 = arith.addf %410, %412 : vector<2x32xf32>
    %414 = tpu.concatenate %389, %413 in 0 : vector<2x32xf32>, vector<2x32xf32> -> vector<4x32xf32>
    %415 = arith.truncf %414 : vector<4x32xf32> to vector<4x32xbf16>
    %cst_48 = arith.constant dense<0.000000e+00> : vector<4x256xf32>
    %416 = tpu.matmul %415, %6, %cst_48 {dimension_numbers = #tpu.dot_dimension_numbers<[1], [0], [0], [1], [0, 0, 1, 1], [], []>} : vector<4x32xbf16>, vector<32x256xbf16>, vector<4x256xf32> -> vector<4x256xf32>
    %417 = vector.extract_strided_slice %416 {offsets = [0, 0], sizes = [2, 96], strides = [1, 1]} : vector<4x256xf32> to vector<2x96xf32>
    %418 = arith.addf %417, %9 : vector<2x96xf32>
    %419 = vector.extract_strided_slice %5 {offsets = [14, 0], sizes = [2, 96], strides = [1, 1]} : vector<16x256xf32> to vector<2x96xf32>
    %420 = vector.extract_strided_slice %419 {offsets = [0, 0], sizes = [2, 32], strides = [1, 1]} : vector<2x96xf32> to vector<2x32xf32>
    %421 = vector.extract_strided_slice %418 {offsets = [0, 0], sizes = [2, 32], strides = [1, 1]} : vector<2x96xf32> to vector<2x32xf32>
    %422 = arith.addf %420, %421 : vector<2x32xf32>
    %423 = arith.negf %422 : vector<2x32xf32>
    %424 = math.exp %423 : vector<2x32xf32>
    %cst_49 = arith.constant 1.000000e+00 : f32
    %425 = vector.broadcast %cst_49 : f32 to vector<2x32xf32>
    %426 = arith.addf %425, %424 : vector<2x32xf32>
    %427 = arith.divf %425, %426 : vector<2x32xf32>
    %428 = vector.extract_strided_slice %419 {offsets = [0, 32], sizes = [2, 32], strides = [1, 1]} : vector<2x96xf32> to vector<2x32xf32>
    %429 = vector.extract_strided_slice %418 {offsets = [0, 32], sizes = [2, 32], strides = [1, 1]} : vector<2x96xf32> to vector<2x32xf32>
    %430 = arith.addf %428, %429 : vector<2x32xf32>
    %431 = arith.negf %430 : vector<2x32xf32>
    %432 = math.exp %431 : vector<2x32xf32>
    %cst_50 = arith.constant 1.000000e+00 : f32
    %433 = vector.broadcast %cst_50 : f32 to vector<2x32xf32>
    %434 = arith.addf %433, %432 : vector<2x32xf32>
    %435 = arith.divf %433, %434 : vector<2x32xf32>
    %436 = vector.extract_strided_slice %419 {offsets = [0, 64], sizes = [2, 32], strides = [1, 1]} : vector<2x96xf32> to vector<2x32xf32>
    %437 = vector.extract_strided_slice %418 {offsets = [0, 64], sizes = [2, 32], strides = [1, 1]} : vector<2x96xf32> to vector<2x32xf32>
    %438 = arith.mulf %427, %437 : vector<2x32xf32>
    %439 = arith.addf %436, %438 : vector<2x32xf32>
    %440 = math.tanh %439 : vector<2x32xf32>
    %441 = arith.subf %389, %440 : vector<2x32xf32>
    %442 = arith.mulf %435, %441 : vector<2x32xf32>
    %443 = arith.addf %440, %442 : vector<2x32xf32>
    %444 = tpu.concatenate %443, %71 in 1 : vector<2x32xf32>, vector<2x32xf32> -> vector<2x64xf32>
    %c0_51 = arith.constant 0 : index
    %445 = memref.load %arg6[%c0_51] : memref<4xf32, #tpu.memory_space<smem>>
    %446 = vector.broadcast %445 : f32 to vector<2x64xf32>
    %447 = arith.mulf %444, %446 : vector<2x64xf32>
    %c1 = arith.constant 1 : index
    %448 = memref.load %arg6[%c1] : memref<4xf32, #tpu.memory_space<smem>>
    %449 = vector.broadcast %448 : f32 to vector<2x64xf32>
    %450 = arith.addf %447, %449 : vector<2x64xf32>
    %cst_52 = arith.constant 5.000000e-01 : f32
    %451 = vector.broadcast %cst_52 : f32 to vector<2x64xf32>
    %452 = arith.mulf %451, %450 : vector<2x64xf32>
    %cst_53 = arith.constant 4.471500e-02 : f32
    %453 = vector.broadcast %cst_53 : f32 to vector<2x64xf32>
    %454 = arith.mulf %453, %450 : vector<2x64xf32>
    %455 = arith.mulf %454, %450 : vector<2x64xf32>
    %456 = arith.mulf %455, %450 : vector<2x64xf32>
    %457 = arith.addf %450, %456 : vector<2x64xf32>
    %cst_54 = arith.constant 0.797884583 : f32
    %458 = vector.broadcast %cst_54 : f32 to vector<2x64xf32>
    %459 = arith.mulf %458, %457 : vector<2x64xf32>
    %460 = math.tanh %459 : vector<2x64xf32>
    %cst_55 = arith.constant 1.000000e+00 : f32
    %461 = vector.broadcast %cst_55 : f32 to vector<2x64xf32>
    %462 = arith.addf %461, %460 : vector<2x64xf32>
    %463 = arith.mulf %452, %462 : vector<2x64xf32>
    %464 = tpu.concatenate %463, %444 in 1 : vector<2x64xf32>, vector<2x64xf32> -> vector<2x128xf32>
    %465 = arith.truncf %464 : vector<2x128xf32> to vector<2x128xbf16>
    %c0_56 = arith.constant 0 : index
    %c0_57 = arith.constant 0 : index
    %466 = vector.load %arg7[%c0_56, %c0_57] : memref<128x128xbf16, #tpu.memory_space<vmem>>, vector<128x128xbf16>
    %cst_58 = arith.constant dense<0.000000e+00> : vector<2x128xf32>
    %467 = tpu.matmul %465, %466, %cst_58 {dimension_numbers = #tpu.dot_dimension_numbers<[1], [0], [0], [1], [0, 0, 1, 1], [], []>} : vector<2x128xbf16>, vector<128x128xbf16>, vector<2x128xf32> -> vector<2x128xf32>
    %c0_59 = arith.constant 0 : index
    %c0_60 = arith.constant 0 : index
    %468 = vector.load %arg9[%c0_59, %c0_60] : memref<1x128xf32, #tpu.memory_space<vmem>>, vector<1x128xf32>
    %469 = vector.broadcast %468 : vector<1x128xf32> to vector<2x128xf32>
    %470 = arith.addf %467, %469 : vector<2x128xf32>
    %cst_61 = arith.constant 5.000000e-01 : f32
    %471 = vector.broadcast %cst_61 : f32 to vector<2x128xf32>
    %472 = arith.mulf %471, %470 : vector<2x128xf32>
    %cst_62 = arith.constant 4.471500e-02 : f32
    %473 = vector.broadcast %cst_62 : f32 to vector<2x128xf32>
    %474 = arith.mulf %473, %470 : vector<2x128xf32>
    %475 = arith.mulf %474, %470 : vector<2x128xf32>
    %476 = arith.mulf %475, %470 : vector<2x128xf32>
    %477 = arith.addf %470, %476 : vector<2x128xf32>
    %cst_63 = arith.constant 0.797884583 : f32
    %478 = vector.broadcast %cst_63 : f32 to vector<2x128xf32>
    %479 = arith.mulf %478, %477 : vector<2x128xf32>
    %480 = math.tanh %479 : vector<2x128xf32>
    %cst_64 = arith.constant 1.000000e+00 : f32
    %481 = vector.broadcast %cst_64 : f32 to vector<2x128xf32>
    %482 = arith.addf %481, %480 : vector<2x128xf32>
    %483 = arith.mulf %472, %482 : vector<2x128xf32>
    %484 = arith.truncf %483 : vector<2x128xf32> to vector<2x128xbf16>
    %c0_65 = arith.constant 0 : index
    %c0_66 = arith.constant 0 : index
    %485 = vector.load %arg8[%c0_65, %c0_66] : memref<128x128xbf16, #tpu.memory_space<vmem>>, vector<128x128xbf16>
    %cst_67 = arith.constant dense<0.000000e+00> : vector<2x128xf32>
    %486 = tpu.matmul %484, %485, %cst_67 {dimension_numbers = #tpu.dot_dimension_numbers<[1], [0], [0], [1], [0, 0, 1, 1], [], []>} : vector<2x128xbf16>, vector<128x128xbf16>, vector<2x128xf32> -> vector<2x128xf32>
    %c0_68 = arith.constant 0 : index
    %c0_69 = arith.constant 0 : index
    %487 = vector.load %arg10[%c0_68, %c0_69] : memref<1x128xf32, #tpu.memory_space<vmem>>, vector<1x128xf32>
    %488 = vector.broadcast %487 : vector<1x128xf32> to vector<2x128xf32>
    %489 = arith.addf %486, %488 : vector<2x128xf32>
    %490 = vector.extract_strided_slice %489 {offsets = [0, 0], sizes = [2, 64], strides = [1, 1]} : vector<2x128xf32> to vector<2x64xf32>
    %491 = vector.extract_strided_slice %489 {offsets = [0, 64], sizes = [2, 64], strides = [1, 1]} : vector<2x128xf32> to vector<2x64xf32>
    %cst_70 = arith.constant 5.000000e-01 : f32
    %492 = vector.broadcast %cst_70 : f32 to vector<2x64xf32>
    %493 = arith.mulf %492, %491 : vector<2x64xf32>
    %cst_71 = arith.constant 4.471500e-02 : f32
    %494 = vector.broadcast %cst_71 : f32 to vector<2x64xf32>
    %495 = arith.mulf %494, %491 : vector<2x64xf32>
    %496 = arith.mulf %495, %491 : vector<2x64xf32>
    %497 = arith.mulf %496, %491 : vector<2x64xf32>
    %498 = arith.addf %491, %497 : vector<2x64xf32>
    %cst_72 = arith.constant 0.797884583 : f32
    %499 = vector.broadcast %cst_72 : f32 to vector<2x64xf32>
    %500 = arith.mulf %499, %498 : vector<2x64xf32>
    %501 = math.tanh %500 : vector<2x64xf32>
    %cst_73 = arith.constant 1.000000e+00 : f32
    %502 = vector.broadcast %cst_73 : f32 to vector<2x64xf32>
    %503 = arith.addf %502, %501 : vector<2x64xf32>
    %504 = arith.mulf %493, %503 : vector<2x64xf32>
    %c2 = arith.constant 2 : index
    %505 = memref.load %arg6[%c2] : memref<4xf32, #tpu.memory_space<smem>>
    %506 = vector.broadcast %505 : f32 to vector<2x64xf32>
    %507 = arith.mulf %504, %506 : vector<2x64xf32>
    %c3 = arith.constant 3 : index
    %508 = memref.load %arg6[%c3] : memref<4xf32, #tpu.memory_space<smem>>
    %509 = vector.broadcast %508 : f32 to vector<2x64xf32>
    %510 = arith.addf %507, %509 : vector<2x64xf32>
    %511 = arith.addf %490, %510 : vector<2x64xf32>
    %512 = arith.addf %511, %444 : vector<2x64xf32>
    %513 = arith.truncf %512 : vector<2x64xf32> to vector<2x64xbf16>
    %c0_74 = arith.constant 0 : index
    %c0_75 = arith.constant 0 : index
    %514 = vector.load %arg11[%c0_74, %c0_75] : memref<64x128xbf16, #tpu.memory_space<vmem>>, vector<64x128xbf16>
    %cst_76 = arith.constant dense<0.000000e+00> : vector<2x128xf32>
    %515 = tpu.matmul %513, %514, %cst_76 {dimension_numbers = #tpu.dot_dimension_numbers<[1], [0], [0], [1], [0, 0, 1, 1], [], []>} : vector<2x64xbf16>, vector<64x128xbf16>, vector<2x128xf32> -> vector<2x128xf32>
    %c0_77 = arith.constant 0 : index
    %c0_78 = arith.constant 0 : index
    %516 = vector.load %arg12[%c0_77, %c0_78] : memref<1x128xf32, #tpu.memory_space<vmem>>, vector<1x128xf32>
    %517 = vector.broadcast %516 : vector<1x128xf32> to vector<2x128xf32>
    %518 = arith.addf %515, %517 : vector<2x128xf32>
    %c0_79 = arith.constant 0 : index
    %c0_80 = arith.constant 0 : index
    %519 = vector.load %arg13[%c0_79, %c0_80] : memref<2x128xf32, #tpu.memory_space<vmem>>, vector<2x128xf32>
    tpu.vector_store %arg13[%c0_79, %c0_80], %518 {strides = array<i32>} : memref<2x128xf32, #tpu.memory_space<vmem>>, vector<2x128xf32>,
    return
  }
}

</mosaic_0001>

<llo_original>
// kernel: model_forward.1
$region0: #{model_forward.1}
  #allocation0 [shape = 'u32[]', space=smem, size = 0x4, offset = 0x4, fixed_abs, tag = 'smem constant byte address 0x4 - core index']
  #allocation1 [shape = 'u32[144,128]{1,0:T(1,128)}', space=vmem, size = 0x12000, scoped, tag = 'internal scratch']
  %s0 = inlined_call_operand.vmem [shape: bf16[16,16], index: 0, kind: input, shape index: {}]
  %s1 = inlined_call_operand.vmem [shape: bf16[16,256], index: 1, kind: input, shape index: {}]
  %s2 = inlined_call_operand.vmem [shape: f32[1,256], index: 2, kind: input, shape index: {}]
  %s3 = inlined_call_operand.vmem [shape: bf16[32,256], index: 3, kind: input, shape index: {}]
  %s4 = inlined_call_operand.vmem [shape: f32[1,96], index: 4, kind: input, shape index: {}]
  %s5 = inlined_call_operand.vmem [shape: f32[1,96], index: 5, kind: input, shape index: {}]
  %s6 = inlined_call_operand.vmem [shape: f32[4], index: 6, kind: input, shape index: {}]
  %s7 = inlined_call_operand.vmem [shape: bf16[128,128], index: 7, kind: input, shape index: {}]
  %s8 = inlined_call_operand.vmem [shape: bf16[128,128], index: 8, kind: input, shape index: {}]
  %s9 = inlined_call_operand.vmem [shape: f32[1,128], index: 9, kind: input, shape index: {}]
  %s10 = inlined_call_operand.vmem [shape: f32[1,128], index: 10, kind: input, shape index: {}]
  %s11 = inlined_call_operand.vmem [shape: bf16[64,128], index: 11, kind: input, shape index: {}]
  %s12 = inlined_call_operand.vmem [shape: f32[1,128], index: 12, kind: input, shape index: {}]
  %s13 = inlined_call_operand.hbm [shape: f32[2,128], index: 13, kind: output, shape index: {}]
  %s14 = sld [smem:[#allocation0]]
  $region66: #{model_forward.1} parent=0
    _
  %s16 = ssub.s32 1, %s14
  %s17 = scalar_select 0, %s16, %s14
  $region1: #{model_forward.1} parent=0
    #allocation2 [shape = 'u8[512]{0}', space=smem, size = 0x200, scoped, tag = 'input window, operand 6, single buffered']
    #allocation3 [shape = 's32[1]{0}', space=sflag, size = 0x4, scoped, tag = 'scoped memory for model_forward.1']
    #allocation4 [shape = 's32[1]{0}', space=sflag, size = 0x4, scoped, tag = 'scoped memory for model_forward.1']
    #allocation5 [shape = 'u8[1024]{0}', space=vmem, size = 0x400, scoped, tag = 'output window, operand 0, single buffered']
    %18 = vsyncpa [#allocation4], 0
    %19 = vsyncpa [#allocation3], 0
    // Predicated region
    $region2: #{model_forward.1} parent=1 // pred_check
      _
    $region3: #{model_forward.1} parent=1 // pred_check_branch
      %21 = sbr.rel (0) target = $region5
    $region4: #{model_forward.1} parent=1 // pred_region
      _
    $region5: #{model_forward.1} parent=1 // pred_fallthru
      _
    // Predicated region
    $region6: #{model_forward.1} parent=1 // pred_check
      _
    $region7: #{model_forward.1} parent=1 // pred_check_branch
      %23 = sbr.rel (0) target = $region9
    $region8: #{model_forward.1} parent=1 // pred_region
      _
    $region9: #{model_forward.1} parent=1 // pred_fallthru
      _
    // Predicated region
    $region10: #{model_forward.1} parent=1 // pred_check
      _
    $region11: #{model_forward.1} parent=1 // pred_check_branch
      %25 = sbr.rel (0) target = $region13
    $region12: #{model_forward.1} parent=1 // pred_region
      _
    $region13: #{model_forward.1} parent=1 // pred_fallthru
      _
    // Predicated region
    $region14: #{model_forward.1} parent=1 // pred_check
      _
    $region15: #{model_forward.1} parent=1 // pred_check_branch
      %27 = sbr.rel (0) target = $region17
    $region16: #{model_forward.1} parent=1 // pred_region
      _
    $region17: #{model_forward.1} parent=1 // pred_fallthru
      _
    // Predicated region
    $region18: #{model_forward.1} parent=1 // pred_check
      _
    $region19: #{model_forward.1} parent=1 // pred_check_branch
      %29 = sbr.rel (0) target = $region21
    $region20: #{model_forward.1} parent=1 // pred_region
      _
    $region21: #{model_forward.1} parent=1 // pred_fallthru
      _
    // Predicated region
    $region22: #{model_forward.1} parent=1 // pred_check
      _
    $region23: #{model_forward.1} parent=1 // pred_check_branch
      %31 = sbr.rel (0) target = $region25
    $region24: #{model_forward.1} parent=1 // pred_region
      _
    $region25: #{model_forward.1} parent=1 // pred_fallthru
      _
    // Predicated region
    $region26: #{model_forward.1} parent=1 // pred_check
      _
    $region27: #{model_forward.1} parent=1 // pred_check_branch
      %33 = sbr.rel (0) target = $region29
    $region28: #{model_forward.1} parent=1 // pred_region
      %s35 = ssub.s32 16, 16
      %36 = vsyncadd [#allocation4], %s35
      %s38 = sshll.u32 %s6, 4
      %s39 = int_to_ptr.vmem [resolvable:$true] %s38
      %41 = dma.vmem_to_smem %s39, 16, [#allocation2], [#allocation4]
    $region29: #{model_forward.1} parent=1 // pred_fallthru
      _
    // Predicated region
    $region30: #{model_forward.1} parent=1 // pred_check
      _
    $region31: #{model_forward.1} parent=1 // pred_check_branch
      %43 = sbr.rel (0) target = $region33
    $region32: #{model_forward.1} parent=1 // pred_region
      _
    $region33: #{model_forward.1} parent=1 // pred_fallthru
      _
    // Predicated region
    $region34: #{model_forward.1} parent=1 // pred_check
      _
    $region35: #{model_forward.1} parent=1 // pred_check_branch
      %45 = sbr.rel (0) target = $region37
    $region36: #{model_forward.1} parent=1 // pred_region
      _
    $region37: #{model_forward.1} parent=1 // pred_fallthru
      _
    // Predicated region
    $region38: #{model_forward.1} parent=1 // pred_check
      _
    $region39: #{model_forward.1} parent=1 // pred_check_branch
      %47 = sbr.rel (0) target = $region41
    $region40: #{model_forward.1} parent=1 // pred_region
      _
    $region41: #{model_forward.1} parent=1 // pred_fallthru
      _
    // Predicated region
    $region42: #{model_forward.1} parent=1 // pred_check
      _
    $region43: #{model_forward.1} parent=1 // pred_check_branch
      %49 = sbr.rel (0) target = $region45
    $region44: #{model_forward.1} parent=1 // pred_region
      _
    $region45: #{model_forward.1} parent=1 // pred_fallthru
      _
    // Predicated region
    $region46: #{model_forward.1} parent=1 // pred_check
      _
    $region47: #{model_forward.1} parent=1 // pred_check_branch
      %51 = sbr.rel (0) target = $region49
    $region48: #{model_forward.1} parent=1 // pred_region
      _
    $region49: #{model_forward.1} parent=1 // pred_fallthru
      _
    // Predicated region
    $region50: #{model_forward.1} parent=1 // pred_check
      _
    $region51: #{model_forward.1} parent=1 // pred_check_branch
      %53 = sbr.rel (0) target = $region53
    $region52: #{model_forward.1} parent=1 // pred_region
      _
    $region53: #{model_forward.1} parent=1 // pred_fallthru
      _
    // Predicated region
    $region54: #{model_forward.1} parent=1 // pred_check
      _
    $region55: #{model_forward.1} parent=1 // pred_check_branch
      %55 = sbr.rel (0) target = $region57
    $region56: #{model_forward.1} parent=1 // pred_region
      %56 = dma.done [#allocation4], 16
    $region57: #{model_forward.1} parent=1 // pred_fallthru
      _
    %57 = sfence
    %v59 = vld [vmem:[%s0] sm:$0xf]
    %v60 = vld [vmem:[%s0 + $0x4] sm:$0xf]
    %v61 = vld [vmem:[%s1] sm:$0xff]
    %v62 = vld [vmem:[%s1 + $0x8] sm:$0xff]
    %v63 = vld [vmem:[%s2] sm:$0x3]
    %v65 = vlaneseq
    %v66 = vshrl.u32 %v65, 7
    %v67 = vsub.s32 0, %v66
    %v68 = vrot.slane %v63, %v67
    %v69 = vlaneseq
    %v70 = vshrl.u32 %v69, 7
    %v71 = vsub.s32 1, %v70
    %v72 = vrot.slane %v63, %v71
    %v77 = vunpack.c.l.b16 %v59
    %v78 = vunpack.c.l.b16 %v60
    %v79 = vpack.c.b16 %v78, %v77
    %v82 = vunpack.c.l.b16 %v61
    %v83 = vunpack.c.h.b16 %v61
    %v84 = vunpack.c.l.b16 %v62
    %v85 = vunpack.c.h.b16 %v62
    %v86 = vpack.c.b16 %v84, %v82
    %v87 = vpack.c.b16 %v85, %v83
    %vm90 = vcmask 130048
    %v92 = vsel %vm90, %v79, 0
    %94 = vmatprep.subr.bf16.mxu0 %v87
    %95 = vmatpush1.bf16.msra.mxu0 %v86
    %96 = vmatprep.subr.bf16.mxu0 0
    %97 = vmatpush1.bf16.msra.mxu0 0
    %98 = vmatprep.subr.bf16.mxu0 0
    %99 = vmatpush1.bf16.msra.mxu0 0
    %100 = vmatprep.subr.bf16.mxu0 0
    %101 = vmatpush1.bf16.msra.mxu0 0
    %102 = vmatprep.subr.bf16.mxu0 0
    %103 = vmatpush1.bf16.msra.mxu0 0
    %104 = vmatprep.subr.bf16.mxu0 0
    %105 = vmatpush1.bf16.msra.mxu0 0
    %106 = vmatprep.subr.bf16.mxu0 0
    %107 = vmatpush1.bf16.msra.mxu0 0
    %108 = vmatprep.subr.bf16.mxu0 0
    %109 = vmatpush1.bf16.msra.mxu0 0
    %110 = vmatprep.subr.bf16.mxu0 0
    %111 = vmatpush1.bf16.msra.mxu0 0
    %112 = vmatprep.subr.bf16.mxu0 0
    %113 = vmatpush1.bf16.msra.mxu0 0
    %114 = vmatprep.subr.bf16.mxu0 0
    %115 = vmatpush1.bf16.msra.mxu0 0
    %116 = vmatprep.subr.bf16.mxu0 0
    %117 = vmatpush1.bf16.msra.mxu0 0
    %118 = vmatprep.subr.bf16.mxu0 0
    %119 = vmatpush1.bf16.msra.mxu0 0
    %120 = vmatprep.subr.bf16.mxu0 0
    %121 = vmatpush1.bf16.msra.mxu0 0
    %122 = vmatprep.subr.bf16.mxu0 0
    %123 = vmatpush1.bf16.msra.mxu0 0
    %124 = vmatprep.subr.bf16.mxu0 0
    %125 = vmatpush1.bf16.msra.mxu0 0
    %126 = vmatprep.mubr.bf16.mxu0 0
    %127 = vmatmul.mubr.bf16.gmra.mrb[0].mxu0 %v92
    %v128 = vpop.f32.mrb[0].mxu0
    %v129 = vadd.f32 %v68, %v128
    %v130 = vpop.f32.mrb[0].mxu0
    %v131 = vadd.f32 %v72, %v130
    %v132 = vpop.f32.mrb[0].mxu0
    %v133 = vadd.f32 %v68, %v132
    %v134 = vpop.f32.mrb[0].mxu0
    %v135 = vadd.f32 %v72, %v134
    %136 = vdwg.mxu0
    %v137 = vld [vmem:[%s3] sm:$0xff]
    %v138 = vld [vmem:[%s3 + $0x8] sm:$0xff]
    %v139 = vld [vmem:[%s3 + $0x10] sm:$0xff]
    %v140 = vld [vmem:[%s3 + $0x18] sm:$0xff]
    %v141 = vld [vmem:[%s4] sm:$0x1]
    %v143 = vlaneseq
    %v144 = vshrl.u32 %v143, 7
    %v145 = vsub.s32 0, %v144
    %v146 = vrot.slane %v141, %v145
    %v148 = vld [vmem:[%s5] sm:$0x1]
    %v150 = vlaneseq
    %v151 = vshrl.u32 %v150, 7
    %v152 = vsub.s32 0, %v151
    %v153 = vrot.slane %v148, %v152
    %v155 = vpack.c.bf16 0.0, 0.0
    %v160 = vunpack.c.l.b16 %v137
    %v161 = vunpack.c.h.b16 %v137
    %v162 = vunpack.c.l.b16 %v138
    %v163 = vunpack.c.h.b16 %v138
    %v164 = vunpack.c.l.b16 %v139
    %v165 = vunpack.c.h.b16 %v139
    %v166 = vunpack.c.l.b16 %v140
    %v167 = vunpack.c.h.b16 %v140
    %v168 = vpack.c.b16 %v162, %v160
    %v169 = vpack.c.b16 %v163, %v161
    %v170 = vpack.c.b16 %v166, %v164
    %v171 = vpack.c.b16 %v167, %v165
    %vm176 = vcmask 261120
    %v178 = vsel %vm176, %v155, 0
    %180 = vmatprep.subr.bf16.mxu0 %v169
    %181 = vmatpush1.bf16.msra.mxu0 %v168
    %182 = vmatprep.subr.bf16.mxu0 %v171
    %183 = vmatpush1.bf16.msra.mxu0 %v170
    %184 = vmatprep.subr.bf16.mxu0 0
    %185 = vmatpush1.bf16.msra.mxu0 0
    %186 = vmatprep.subr.bf16.mxu0 0
    %187 = vmatpush1.bf16.msra.mxu0 0
    %188 = vmatprep.subr.bf16.mxu0 0
    %189 = vmatpush1.bf16.msra.mxu0 0
    %190 = vmatprep.subr.bf16.mxu0 0
    %191 = vmatpush1.bf16.msra.mxu0 0
    %192 = vmatprep.subr.bf16.mxu0 0
    %193 = vmatpush1.bf16.msra.mxu0 0
    %194 = vmatprep.subr.bf16.mxu0 0
    %195 = vmatpush1.bf16.msra.mxu0 0
    %196 = vmatprep.subr.bf16.mxu0 0
    %197 = vmatpush1.bf16.msra.mxu0 0
    %198 = vmatprep.subr.bf16.mxu0 0
    %199 = vmatpush1.bf16.msra.mxu0 0
    %200 = vmatprep.subr.bf16.mxu0 0
    %201 = vmatpush1.bf16.msra.mxu0 0
    %202 = vmatprep.subr.bf16.mxu0 0
    %203 = vmatpush1.bf16.msra.mxu0 0
    %204 = vmatprep.subr.bf16.mxu0 0
    %205 = vmatpush1.bf16.msra.mxu0 0
    %206 = vmatprep.subr.bf16.mxu0 0
    %207 = vmatpush1.bf16.msra.mxu0 0
    %208 = vmatprep.subr.bf16.mxu0 0
    %209 = vmatpush1.bf16.msra.mxu0 0
    %210 = vmatprep.subr.bf16.mxu0 0
    %211 = vmatpush1.bf16.msra.mxu0 0
    %212 = vmatprep.mubr.bf16.mxu0 0
    %213 = vmatmul.mubr.bf16.gmra.mrb[0].mxu0 %v178
    %v214 = vpop.f32.mrb[0].mxu0
    %v215 = vadd.f32 0.0, %v214
    %v216 = vpop.f32.mrb[0].mxu0
    %v217 = vadd.f32 0.0, %v216
    %v218 = vpop.f32.mrb[0].mxu0
    %v219 = vpop.f32.mrb[0].mxu0
    %220 = vdwg.mxu0
    %v221 = vadd.f32 %v215, %v146
    %v222 = vadd.f32 %v217, %v153
    %v223 = vadd.f32 %v129, %v221
    %v224 = vxor.u32 %v223, 2147483648
    %v225 = vmul.f32 %v224, 1.442695
    %v226 = vpow.pop %v225
    %v227 = vadd.f32 %v226, 1.0
    %v228 = vrcp.pop %v227
    %v229 = vmul.f32 1.0, %v228
    %231 = vrot.lane.b32.xlu0 %v221, 64
    %v232 = vpop.permute.xlu0 %231
    %v234 = vmul.f32 %v229, %v232
    %236 = vrot.lane.b32.xlu0 %v234, 64
    %v237 = vpop.permute.xlu0 %236
    %v239 = vadd.f32 %v129, %v237
    %v240 = vtanh.pop %v239
    %v241 = vsub.f32 0.0, %v240
    %243 = vrot.lane.b32.xlu0 %v241, 96
    %v244 = vpop.permute.xlu0 %243
    %v246 = vmul.f32 %v229, %v244
    %248 = vrot.lane.b32.xlu0 %v246, 32
    %v249 = vpop.permute.xlu0 %248
    %v251 = vadd.f32 %v240, %v249
    %v253 = vrot.slane %v222, 4
    %v255 = vadd.f32 %v135, %v253
    %v256 = vxor.u32 %v255, 2147483648
    %v257 = vmul.f32 %v256, 1.442695
    %v258 = vpow.pop %v257
    %v259 = vadd.f32 %v258, 1.0
    %v260 = vrcp.pop %v259
    %v261 = vmul.f32 1.0, %v260
    %262 = vrot.lane.b32.xlu0 %v253, 64
    %v263 = vpop.permute.xlu0 %262
    %v265 = vmul.f32 %v261, %v263
    %267 = vrot.lane.b32.xlu0 %v265, 64
    %v268 = vpop.permute.xlu0 %267
    %v270 = vadd.f32 %v135, %v268
    %v271 = vtanh.pop %v270
    %v272 = vsub.f32 0.0, %v271
    %274 = vrot.lane.b32.xlu0 %v272, 96
    %v275 = vpop.permute.xlu0 %274
    %v277 = vmul.f32 %v261, %v275
    %279 = vrot.lane.b32.xlu0 %v277, 32
    %v280 = vpop.permute.xlu0 %279
    %v282 = vadd.f32 %v271, %v280
    %v284 = vrot.slane %v282, 4
    %vm286 = vcmask 1041408
    %v287 = vsel %vm286, %v251, %v284
    %v288 = vpack.c.bf16 %v287, %v287
    %290 = vrot.lane.b32.xlu0 %v288, 64
    %v291 = vpop.permute.xlu0 %290
    %v293 = vsel %vm176, %v291, 0
    %295 = vmatprep.subr.bf16.mxu0 %v169
    %296 = vmatpush1.bf16.msra.mxu0 %v168
    %297 = vmatprep.subr.bf16.mxu0 %v171
    %298 = vmatpush1.bf16.msra.mxu0 %v170
    %299 = vmatprep.subr.bf16.mxu0 0
    %300 = vmatpush1.bf16.msra.mxu0 0
    %301 = vmatprep.subr.bf16.mxu0 0
    %302 = vmatpush1.bf16.msra.mxu0 0
    %303 = vmatprep.subr.bf16.mxu0 0
    %304 = vmatpush1.bf16.msra.mxu0 0
    %305 = vmatprep.subr.bf16.mxu0 0
    %306 = vmatpush1.bf16.msra.mxu0 0
    %307 = vmatprep.subr.bf16.mxu0 0
    %308 = vmatpush1.bf16.msra.mxu0 0
    %309 = vmatprep.subr.bf16.mxu0 0
    %310 = vmatpush1.bf16.msra.mxu0 0
    %311 = vmatprep.subr.bf16.mxu0 0
    %312 = vmatpush1.bf16.msra.mxu0 0
    %313 = vmatprep.subr.bf16.mxu0 0
    %314 = vmatpush1.bf16.msra.mxu0 0
    %315 = vmatprep.subr.bf16.mxu0 0
    %316 = vmatpush1.bf16.msra.mxu0 0
    %317 = vmatprep.subr.bf16.mxu0 0
    %318 = vmatpush1.bf16.msra.mxu0 0
    %319 = vmatprep.subr.bf16.mxu0 0
    %320 = vmatpush1.bf16.msra.mxu0 0
    %321 = vmatprep.subr.bf16.mxu0 0
    %322 = vmatpush1.bf16.msra.mxu0 0
    %323 = vmatprep.subr.bf16.mxu0 0
    %324 = vmatpush1.bf16.msra.mxu0 0
    %325 = vmatprep.subr.bf16.mxu0 0
    %326 = vmatpush1.bf16.msra.mxu0 0
    %327 = vmatprep.mubr.bf16.mxu0 0
    %328 = vmatmul.mubr.bf16.gmra.mrb[0].mxu0 %v293
    %v329 = vpop.f32.mrb[0].mxu0
    %v330 = vadd.f32 0.0, %v329
    %v331 = vpop.f32.mrb[0].mxu0
    %v332 = vadd.f32 0.0, %v331
    %v333 = vpop.f32.mrb[0].mxu0
    %v334 = vpop.f32.mrb[0].mxu0
    %335 = vdwg.mxu0
    %v336 = vadd.f32 %v330, %v146
    %v337 = vadd.f32 %v332, %v153
    %v339 = vrot.slane %v336, 6
    %v341 = vadd.f32 %v129, %v339
    %v342 = vxor.u32 %v341, 2147483648
    %v343 = vmul.f32 %v342, 1.442695
    %v344 = vpow.pop %v343
    %v345 = vadd.f32 %v344, 1.0
    %v346 = vrcp.pop %v345
    %v347 = vmul.f32 1.0, %v346
    %348 = vrot.lane.b32.xlu0 %v339, 64
    %v349 = vpop.permute.xlu0 %348
    %v351 = vmul.f32 %v347, %v349
    %353 = vrot.lane.b32.xlu0 %v351, 64
    %v354 = vpop.permute.xlu0 %353
    %v356 = vadd.f32 %v129, %v354
    %v357 = vtanh.pop %v356
    %v359 = vrot.slane %v357, 2
    %v361 = vsub.f32 %v251, %v359
    %v363 = vrot.slane %v361, 6
    %364 = vrot.lane.b32.xlu0 %v363, 96
    %v365 = vpop.permute.xlu0 %364
    %v367 = vmul.f32 %v347, %v365
    %369 = vrot.lane.b32.xlu0 %v367, 32
    %v370 = vpop.permute.xlu0 %369
    %v372 = vadd.f32 %v357, %v370
    %v374 = vrot.slane %v337, 6
    %v376 = vadd.f32 %v135, %v374
    %v377 = vxor.u32 %v376, 2147483648
    %v378 = vmul.f32 %v377, 1.442695
    %v379 = vpow.pop %v378
    %v380 = vadd.f32 %v379, 1.0
    %v381 = vrcp.pop %v380
    %v382 = vmul.f32 1.0, %v381
    %383 = vrot.lane.b32.xlu0 %v374, 64
    %v384 = vpop.permute.xlu0 %383
    %v386 = vmul.f32 %v382, %v384
    %388 = vrot.lane.b32.xlu0 %v386, 64
    %v389 = vpop.permute.xlu0 %388
    %v391 = vadd.f32 %v135, %v389
    %v392 = vtanh.pop %v391
    %v394 = vrot.slane %v392, 6
    %v396 = vsub.f32 %v282, %v394
    %v398 = vrot.slane %v396, 2
    %399 = vrot.lane.b32.xlu0 %v398, 96
    %v400 = vpop.permute.xlu0 %399
    %v402 = vmul.f32 %v382, %v400
    %404 = vrot.lane.b32.xlu0 %v402, 32
    %v405 = vpop.permute.xlu0 %404
    %v407 = vadd.f32 %v392, %v405
    %v409 = vrot.slane %v372, 2
    %v412 = vrot.slane %v407, 2
    %v414 = vsel %vm286, %v409, %v412
    %v415 = vpack.c.bf16 %v414, %v414
    %417 = vrot.lane.b32.xlu0 %v415, 64
    %v418 = vpop.permute.xlu0 %417
    %v420 = vsel %vm176, %v418, 0
    %422 = vmatprep.subr.bf16.mxu0 %v169
    %423 = vmatpush1.bf16.msra.mxu0 %v168
    %424 = vmatprep.subr.bf16.mxu0 %v171
    %425 = vmatpush1.bf16.msra.mxu0 %v170
    %426 = vmatprep.subr.bf16.mxu0 0
    %427 = vmatpush1.bf16.msra.mxu0 0
    %428 = vmatprep.subr.bf16.mxu0 0
    %429 = vmatpush1.bf16.msra.mxu0 0
    %430 = vmatprep.subr.bf16.mxu0 0
    %431 = vmatpush1.bf16.msra.mxu0 0
    %432 = vmatprep.subr.bf16.mxu0 0
    %433 = vmatpush1.bf16.msra.mxu0 0
    %434 = vmatprep.subr.bf16.mxu0 0
    %435 = vmatpush1.bf16.msra.mxu0 0
    %436 = vmatprep.subr.bf16.mxu0 0
    %437 = vmatpush1.bf16.msra.mxu0 0
    %438 = vmatprep.subr.bf16.mxu0 0
    %439 = vmatpush1.bf16.msra.mxu0 0
    %440 = vmatprep.subr.bf16.mxu0 0
    %441 = vmatpush1.bf16.msra.mxu0 0
    %442 = vmatprep.subr.bf16.mxu0 0
    %443 = vmatpush1.bf16.msra.mxu0 0
    %444 = vmatprep.subr.bf16.mxu0 0
    %445 = vmatpush1.bf16.msra.mxu0 0
    %446 = vmatprep.subr.bf16.mxu0 0
    %447 = vmatpush1.bf16.msra.mxu0 0
    %448 = vmatprep.subr.bf16.mxu0 0
    %449 = vmatpush1.bf16.msra.mxu0 0
    %450 = vmatprep.subr.bf16.mxu0 0
    %451 = vmatpush1.bf16.msra.mxu0 0
    %452 = vmatprep.subr.bf16.mxu0 0
    %453 = vmatpush1.bf16.msra.mxu0 0
    %454 = vmatprep.mubr.bf16.mxu0 0
    %455 = vmatmul.mubr.bf16.gmra.mrb[0].mxu0 %v420
    %v456 = vpop.f32.mrb[0].mxu0
    %v457 = vadd.f32 0.0, %v456
    %v458 = vpop.f32.mrb[0].mxu0
    %v459 = vadd.f32 0.0, %v458
    %v460 = vpop.f32.mrb[0].mxu0
    %v461 = vpop.f32.mrb[0].mxu0
    %462 = vdwg.mxu0
    %v463 = vadd.f32 %v457, %v146
    %v464 = vadd.f32 %v459, %v153
    %v466 = vrot.slane %v463, 4
    %v468 = vadd.f32 %v129, %v466
    %v469 = vxor.u32 %v468, 2147483648
    %v470 = vmul.f32 %v469, 1.442695
    %v471 = vpow.pop %v470
    %v472 = vadd.f32 %v471, 1.0
    %v473 = vrcp.pop %v472
    %v474 = vmul.f32 1.0, %v473
    %475 = vrot.lane.b32.xlu0 %v466, 64
    %v476 = vpop.permute.xlu0 %475
    %v478 = vmul.f32 %v474, %v476
    %480 = vrot.lane.b32.xlu0 %v478, 64
    %v481 = vpop.permute.xlu0 %480
    %v483 = vadd.f32 %v129, %v481
    %v484 = vtanh.pop %v483
    %v486 = vrot.slane %v484, 2
    %v488 = vsub.f32 %v372, %v486
    %v490 = vrot.slane %v488, 6
    %491 = vrot.lane.b32.xlu0 %v490, 96
    %v492 = vpop.permute.xlu0 %491
    %v494 = vmul.f32 %v474, %v492
    %496 = vrot.lane.b32.xlu0 %v494, 32
    %v497 = vpop.permute.xlu0 %496
    %v499 = vadd.f32 %v484, %v497
    %v500 = vadd.f32 %v135, %v464
    %v501 = vxor.u32 %v500, 2147483648
    %v502 = vmul.f32 %v501, 1.442695
    %v503 = vpow.pop %v502
    %v504 = vadd.f32 %v503, 1.0
    %v505 = vrcp.pop %v504
    %v506 = vmul.f32 1.0, %v505
    %508 = vrot.lane.b32.xlu0 %v464, 64
    %v509 = vpop.permute.xlu0 %508
    %v511 = vmul.f32 %v506, %v509
    %513 = vrot.lane.b32.xlu0 %v511, 64
    %v514 = vpop.permute.xlu0 %513
    %v516 = vadd.f32 %v135, %v514
    %v517 = vtanh.pop %v516
    %v519 = vrot.slane %v517, 6
    %v521 = vsub.f32 %v407, %v519
    %v523 = vrot.slane %v521, 2
    %524 = vrot.lane.b32.xlu0 %v523, 96
    %v525 = vpop.permute.xlu0 %524
    %v527 = vmul.f32 %v506, %v525
    %529 = vrot.lane.b32.xlu0 %v527, 32
    %v530 = vpop.permute.xlu0 %529
    %v532 = vadd.f32 %v517, %v530
    %v534 = vrot.slane %v499, 4
    %v536 = vsel %vm286, %v534, %v532
    %v537 = vpack.c.bf16 %v536, %v536
    %539 = vrot.lane.b32.xlu0 %v537, 64
    %v540 = vpop.permute.xlu0 %539
    %v542 = vsel %vm176, %v540, 0
    %544 = vmatprep.subr.bf16.mxu0 %v169
    %545 = vmatpush1.bf16.msra.mxu0 %v168
    %546 = vmatprep.subr.bf16.mxu0 %v171
    %547 = vmatpush1.bf16.msra.mxu0 %v170
    %548 = vmatprep.subr.bf16.mxu0 0
    %549 = vmatpush1.bf16.msra.mxu0 0
    %550 = vmatprep.subr.bf16.mxu0 0
    %551 = vmatpush1.bf16.msra.mxu0 0
    %552 = vmatprep.subr.bf16.mxu0 0
    %553 = vmatpush1.bf16.msra.mxu0 0
    %554 = vmatprep.subr.bf16.mxu0 0
    %555 = vmatpush1.bf16.msra.mxu0 0
    %556 = vmatprep.subr.bf16.mxu0 0
    %557 = vmatpush1.bf16.msra.mxu0 0
    %558 = vmatprep.subr.bf16.mxu0 0
    %559 = vmatpush1.bf16.msra.mxu0 0
    %560 = vmatprep.subr.bf16.mxu0 0
    %561 = vmatpush1.bf16.msra.mxu0 0
    %562 = vmatprep.subr.bf16.mxu0 0
    %563 = vmatpush1.bf16.msra.mxu0 0
    %564 = vmatprep.subr.bf16.mxu0 0
    %565 = vmatpush1.bf16.msra.mxu0 0
    %566 = vmatprep.subr.bf16.mxu0 0
    %567 = vmatpush1.bf16.msra.mxu0 0
    %568 = vmatprep.subr.bf16.mxu0 0
    %569 = vmatpush1.bf16.msra.mxu0 0
    %570 = vmatprep.subr.bf16.mxu0 0
    %571 = vmatpush1.bf16.msra.mxu0 0
    %572 = vmatprep.subr.bf16.mxu0 0
    %573 = vmatpush1.bf16.msra.mxu0 0
    %574 = vmatprep.subr.bf16.mxu0 0
    %575 = vmatpush1.bf16.msra.mxu0 0
    %576 = vmatprep.mubr.bf16.mxu0 0
    %577 = vmatmul.mubr.bf16.gmra.mrb[0].mxu0 %v542
    %v578 = vpop.f32.mrb[0].mxu0
    %v579 = vadd.f32 0.0, %v578
    %v580 = vpop.f32.mrb[0].mxu0
    %v581 = vadd.f32 0.0, %v580
    %v582 = vpop.f32.mrb[0].mxu0
    %v583 = vpop.f32.mrb[0].mxu0
    %584 = vdwg.mxu0
    %v585 = vadd.f32 %v579, %v146
    %v586 = vadd.f32 %v581, %v153
    %v588 = vrot.slane %v585, 2
    %v590 = vadd.f32 %v129, %v588
    %v591 = vxor.u32 %v590, 2147483648
    %v592 = vmul.f32 %v591, 1.442695
    %v593 = vpow.pop %v592
    %v594 = vadd.f32 %v593, 1.0
    %v595 = vrcp.pop %v594
    %v596 = vmul.f32 1.0, %v595
    %597 = vrot.lane.b32.xlu0 %v588, 64
    %v598 = vpop.permute.xlu0 %597
    %v600 = vmul.f32 %v596, %v598
    %602 = vrot.lane.b32.xlu0 %v600, 64
    %v603 = vpop.permute.xlu0 %602
    %v605 = vadd.f32 %v129, %v603
    %v606 = vtanh.pop %v605
    %v608 = vrot.slane %v606, 2
    %v610 = vsub.f32 %v499, %v608
    %v612 = vrot.slane %v610, 6
    %613 = vrot.lane.b32.xlu0 %v612, 96
    %v614 = vpop.permute.xlu0 %613
    %v616 = vmul.f32 %v596, %v614
    %618 = vrot.lane.b32.xlu0 %v616, 32
    %v619 = vpop.permute.xlu0 %618
    %v621 = vadd.f32 %v606, %v619
    %v623 = vrot.slane %v586, 2
    %v625 = vadd.f32 %v135, %v623
    %v626 = vxor.u32 %v625, 2147483648
    %v627 = vmul.f32 %v626, 1.442695
    %v628 = vpow.pop %v627
    %v629 = vadd.f32 %v628, 1.0
    %v630 = vrcp.pop %v629
    %v631 = vmul.f32 1.0, %v630
    %632 = vrot.lane.b32.xlu0 %v623, 64
    %v633 = vpop.permute.xlu0 %632
    %v635 = vmul.f32 %v631, %v633
    %637 = vrot.lane.b32.xlu0 %v635, 64
    %v638 = vpop.permute.xlu0 %637
    %v640 = vadd.f32 %v135, %v638
    %v641 = vtanh.pop %v640
    %v643 = vrot.slane %v641, 6
    %v645 = vsub.f32 %v532, %v643
    %v647 = vrot.slane %v645, 2
    %648 = vrot.lane.b32.xlu0 %v647, 96
    %v649 = vpop.permute.xlu0 %648
    %v651 = vmul.f32 %v631, %v649
    %653 = vrot.lane.b32.xlu0 %v651, 32
    %v654 = vpop.permute.xlu0 %653
    %v656 = vadd.f32 %v641, %v654
    %v658 = vrot.slane %v621, 6
    %v661 = vrot.slane %v656, 6
    %v663 = vsel %vm286, %v658, %v661
    %v664 = vpack.c.bf16 %v663, %v663
    %666 = vrot.lane.b32.xlu0 %v664, 64
    %v667 = vpop.permute.xlu0 %666
    %v669 = vsel %vm176, %v667, 0
    %671 = vmatprep.subr.bf16.mxu0 %v169
    %672 = vmatpush1.bf16.msra.mxu0 %v168
    %673 = vmatprep.subr.bf16.mxu0 %v171
    %674 = vmatpush1.bf16.msra.mxu0 %v170
    %675 = vmatprep.subr.bf16.mxu0 0
    %676 = vmatpush1.bf16.msra.mxu0 0
    %677 = vmatprep.subr.bf16.mxu0 0
    %678 = vmatpush1.bf16.msra.mxu0 0
    %679 = vmatprep.subr.bf16.mxu0 0
    %680 = vmatpush1.bf16.msra.mxu0 0
    %681 = vmatprep.subr.bf16.mxu0 0
    %682 = vmatpush1.bf16.msra.mxu0 0
    %683 = vmatprep.subr.bf16.mxu0 0
    %684 = vmatpush1.bf16.msra.mxu0 0
    %685 = vmatprep.subr.bf16.mxu0 0
    %686 = vmatpush1.bf16.msra.mxu0 0
    %687 = vmatprep.subr.bf16.mxu0 0
    %688 = vmatpush1.bf16.msra.mxu0 0
    %689 = vmatprep.subr.bf16.mxu0 0
    %690 = vmatpush1.bf16.msra.mxu0 0
    %691 = vmatprep.subr.bf16.mxu0 0
    %692 = vmatpush1.bf16.msra.mxu0 0
    %693 = vmatprep.subr.bf16.mxu0 0
    %694 = vmatpush1.bf16.msra.mxu0 0
    %695 = vmatprep.subr.bf16.mxu0 0
    %696 = vmatpush1.bf16.msra.mxu0 0
    %697 = vmatprep.subr.bf16.mxu0 0
    %698 = vmatpush1.bf16.msra.mxu0 0
    %699 = vmatprep.subr.bf16.mxu0 0
    %700 = vmatpush1.bf16.msra.mxu0 0
    %701 = vmatprep.subr.bf16.mxu0 0
    %702 = vmatpush1.bf16.msra.mxu0 0
    %703 = vmatprep.mubr.bf16.mxu0 0
    %704 = vmatmul.mubr.bf16.gmra.mrb[0].mxu0 %v669
    %v705 = vpop.f32.mrb[0].mxu0
    %v706 = vadd.f32 0.0, %v705
    %v707 = vpop.f32.mrb[0].mxu0
    %v708 = vadd.f32 0.0, %v707
    %v709 = vpop.f32.mrb[0].mxu0
    %v710 = vpop.f32.mrb[0].mxu0
    %711 = vdwg.mxu0
    %v712 = vadd.f32 %v706, %v146
    %v713 = vadd.f32 %v708, %v153
    %v714 = vadd.f32 %v133, %v712
    %v715 = vxor.u32 %v714, 2147483648
    %v716 = vmul.f32 %v715, 1.442695
    %v717 = vpow.pop %v716
    %v718 = vadd.f32 %v717, 1.0
    %v719 = vrcp.pop %v718
    %v720 = vmul.f32 1.0, %v719
    %722 = vrot.lane.b32.xlu0 %v712, 64
    %v723 = vpop.permute.xlu0 %722
    %v725 = vmul.f32 %v720, %v723
    %727 = vrot.lane.b32.xlu0 %v725, 64
    %v728 = vpop.permute.xlu0 %727
    %v730 = vadd.f32 %v133, %v728
    %v731 = vtanh.pop %v730
    %v733 = vrot.slane %v731, 2
    %v735 = vsub.f32 %v621, %v733
    %v737 = vrot.slane %v735, 6
    %738 = vrot.lane.b32.xlu0 %v737, 96
    %v739 = vpop.permute.xlu0 %738
    %v741 = vmul.f32 %v720, %v739
    %743 = vrot.lane.b32.xlu0 %v741, 32
    %v744 = vpop.permute.xlu0 %743
    %v746 = vadd.f32 %v731, %v744
    %v748 = vrot.slane %v713, 4
    %v750 = vadd.f32 %v131, %v748
    %v751 = vxor.u32 %v750, 2147483648
    %v752 = vmul.f32 %v751, 1.442695
    %v753 = vpow.pop %v752
    %v754 = vadd.f32 %v753, 1.0
    %v755 = vrcp.pop %v754
    %v756 = vmul.f32 1.0, %v755
    %757 = vrot.lane.b32.xlu0 %v748, 64
    %v758 = vpop.permute.xlu0 %757
    %v760 = vmul.f32 %v756, %v758
    %762 = vrot.lane.b32.xlu0 %v760, 64
    %v763 = vpop.permute.xlu0 %762
    %v765 = vadd.f32 %v131, %v763
    %v766 = vtanh.pop %v765
    %v768 = vrot.slane %v766, 6
    %v770 = vsub.f32 %v656, %v768
    %v772 = vrot.slane %v770, 2
    %773 = vrot.lane.b32.xlu0 %v772, 96
    %v774 = vpop.permute.xlu0 %773
    %v776 = vmul.f32 %v756, %v774
    %778 = vrot.lane.b32.xlu0 %v776, 32
    %v779 = vpop.permute.xlu0 %778
    %v781 = vadd.f32 %v766, %v779
    %v783 = vrot.slane %v781, 4
    %v785 = vsel %vm286, %v746, %v783
    %v786 = vpack.c.bf16 %v785, %v785
    %788 = vrot.lane.b32.xlu0 %v786, 64
    %v789 = vpop.permute.xlu0 %788
    %v791 = vsel %vm176, %v789, 0
    %793 = vmatprep.subr.bf16.mxu0 %v169
    %794 = vmatpush1.bf16.msra.mxu0 %v168
    %795 = vmatprep.subr.bf16.mxu0 %v171
    %796 = vmatpush1.bf16.msra.mxu0 %v170
    %797 = vmatprep.subr.bf16.mxu0 0
    %798 = vmatpush1.bf16.msra.mxu0 0
    %799 = vmatprep.subr.bf16.mxu0 0
    %800 = vmatpush1.bf16.msra.mxu0 0
    %801 = vmatprep.subr.bf16.mxu0 0
    %802 = vmatpush1.bf16.msra.mxu0 0
    %803 = vmatprep.subr.bf16.mxu0 0
    %804 = vmatpush1.bf16.msra.mxu0 0
    %805 = vmatprep.subr.bf16.mxu0 0
    %806 = vmatpush1.bf16.msra.mxu0 0
    %807 = vmatprep.subr.bf16.mxu0 0
    %808 = vmatpush1.bf16.msra.mxu0 0
    %809 = vmatprep.subr.bf16.mxu0 0
    %810 = vmatpush1.bf16.msra.mxu0 0
    %811 = vmatprep.subr.bf16.mxu0 0
    %812 = vmatpush1.bf16.msra.mxu0 0
    %813 = vmatprep.subr.bf16.mxu0 0
    %814 = vmatpush1.bf16.msra.mxu0 0
    %815 = vmatprep.subr.bf16.mxu0 0
    %816 = vmatpush1.bf16.msra.mxu0 0
    %817 = vmatprep.subr.bf16.mxu0 0
    %818 = vmatpush1.bf16.msra.mxu0 0
    %819 = vmatprep.subr.bf16.mxu0 0
    %820 = vmatpush1.bf16.msra.mxu0 0
    %821 = vmatprep.subr.bf16.mxu0 0
    %822 = vmatpush1.bf16.msra.mxu0 0
    %823 = vmatprep.subr.bf16.mxu0 0
    %824 = vmatpush1.bf16.msra.mxu0 0
    %825 = vmatprep.mubr.bf16.mxu0 0
    %826 = vmatmul.mubr.bf16.gmra.mrb[0].mxu0 %v791
    %v827 = vpop.f32.mrb[0].mxu0
    %v828 = vadd.f32 0.0, %v827
    %v829 = vpop.f32.mrb[0].mxu0
    %v830 = vadd.f32 0.0, %v829
    %v831 = vpop.f32.mrb[0].mxu0
    %v832 = vpop.f32.mrb[0].mxu0
    %833 = vdwg.mxu0
    %v834 = vadd.f32 %v828, %v146
    %v835 = vadd.f32 %v830, %v153
    %v837 = vrot.slane %v834, 6
    %v839 = vadd.f32 %v133, %v837
    %v840 = vxor.u32 %v839, 2147483648
    %v841 = vmul.f32 %v840, 1.442695
    %v842 = vpow.pop %v841
    %v843 = vadd.f32 %v842, 1.0
    %v844 = vrcp.pop %v843
    %v845 = vmul.f32 1.0, %v844
    %846 = vrot.lane.b32.xlu0 %v837, 64
    %v847 = vpop.permute.xlu0 %846
    %v849 = vmul.f32 %v845, %v847
    %851 = vrot.lane.b32.xlu0 %v849, 64
    %v852 = vpop.permute.xlu0 %851
    %v854 = vadd.f32 %v133, %v852
    %v855 = vtanh.pop %v854
    %v857 = vrot.slane %v855, 2
    %v859 = vsub.f32 %v746, %v857
    %v861 = vrot.slane %v859, 6
    %862 = vrot.lane.b32.xlu0 %v861, 96
    %v863 = vpop.permute.xlu0 %862
    %v865 = vmul.f32 %v845, %v863
    %867 = vrot.lane.b32.xlu0 %v865, 32
    %v868 = vpop.permute.xlu0 %867
    %v870 = vadd.f32 %v855, %v868
    %v872 = vrot.slane %v835, 6
    %v874 = vadd.f32 %v131, %v872
    %v875 = vxor.u32 %v874, 2147483648
    %v876 = vmul.f32 %v875, 1.442695
    %v877 = vpow.pop %v876
    %v878 = vadd.f32 %v877, 1.0
    %v879 = vrcp.pop %v878
    %v880 = vmul.f32 1.0, %v879
    %881 = vrot.lane.b32.xlu0 %v872, 64
    %v882 = vpop.permute.xlu0 %881
    %v884 = vmul.f32 %v880, %v882
    %886 = vrot.lane.b32.xlu0 %v884, 64
    %v887 = vpop.permute.xlu0 %886
    %v889 = vadd.f32 %v131, %v887
    %v890 = vtanh.pop %v889
    %v892 = vrot.slane %v890, 6
    %v894 = vsub.f32 %v781, %v892
    %v896 = vrot.slane %v894, 2
    %897 = vrot.lane.b32.xlu0 %v896, 96
    %v898 = vpop.permute.xlu0 %897
    %v900 = vmul.f32 %v880, %v898
    %902 = vrot.lane.b32.xlu0 %v900, 32
    %v903 = vpop.permute.xlu0 %902
    %v905 = vadd.f32 %v890, %v903
    %v907 = vrot.slane %v870, 2
    %v910 = vrot.slane %v905, 2
    %v912 = vsel %vm286, %v907, %v910
    %v913 = vpack.c.bf16 %v912, %v912
    %915 = vrot.lane.b32.xlu0 %v913, 64
    %v916 = vpop.permute.xlu0 %915
    %v918 = vsel %vm176, %v916, 0
    %920 = vmatprep.subr.bf16.mxu0 %v169
    %921 = vmatpush1.bf16.msra.mxu0 %v168
    %922 = vmatprep.subr.bf16.mxu0 %v171
    %923 = vmatpush1.bf16.msra.mxu0 %v170
    %924 = vmatprep.subr.bf16.mxu0 0
    %925 = vmatpush1.bf16.msra.mxu0 0
    %926 = vmatprep.subr.bf16.mxu0 0
    %927 = vmatpush1.bf16.msra.mxu0 0
    %928 = vmatprep.subr.bf16.mxu0 0
    %929 = vmatpush1.bf16.msra.mxu0 0
    %930 = vmatprep.subr.bf16.mxu0 0
    %931 = vmatpush1.bf16.msra.mxu0 0
    %932 = vmatprep.subr.bf16.mxu0 0
    %933 = vmatpush1.bf16.msra.mxu0 0
    %934 = vmatprep.subr.bf16.mxu0 0
    %935 = vmatpush1.bf16.msra.mxu0 0
    %936 = vmatprep.subr.bf16.mxu0 0
    %937 = vmatpush1.bf16.msra.mxu0 0
    %938 = vmatprep.subr.bf16.mxu0 0
    %939 = vmatpush1.bf16.msra.mxu0 0
    %940 = vmatprep.subr.bf16.mxu0 0
    %941 = vmatpush1.bf16.msra.mxu0 0
    %942 = vmatprep.subr.bf16.mxu0 0
    %943 = vmatpush1.bf16.msra.mxu0 0
    %944 = vmatprep.subr.bf16.mxu0 0
    %945 = vmatpush1.bf16.msra.mxu0 0
    %946 = vmatprep.subr.bf16.mxu0 0
    %947 = vmatpush1.bf16.msra.mxu0 0
    %948 = vmatprep.subr.bf16.mxu0 0
    %949 = vmatpush1.bf16.msra.mxu0 0
    %950 = vmatprep.subr.bf16.mxu0 0
    %951 = vmatpush1.bf16.msra.mxu0 0
    %952 = vmatprep.mubr.bf16.mxu0 0
    %953 = vmatmul.mubr.bf16.gmra.mrb[0].mxu0 %v918
    %v954 = vpop.f32.mrb[0].mxu0
    %v955 = vadd.f32 0.0, %v954
    %v956 = vpop.f32.mrb[0].mxu0
    %v957 = vadd.f32 0.0, %v956
    %v958 = vpop.f32.mrb[0].mxu0
    %v959 = vpop.f32.mrb[0].mxu0
    %960 = vdwg.mxu0
    %v961 = vadd.f32 %v955, %v146
    %v962 = vadd.f32 %v957, %v153
    %v964 = vrot.slane %v961, 4
    %v966 = vadd.f32 %v133, %v964
    %v967 = vxor.u32 %v966, 2147483648
    %v968 = vmul.f32 %v967, 1.442695
    %v969 = vpow.pop %v968
    %v970 = vadd.f32 %v969, 1.0
    %v971 = vrcp.pop %v970
    %v972 = vmul.f32 1.0, %v971
    %973 = vrot.lane.b32.xlu0 %v964, 64
    %v974 = vpop.permute.xlu0 %973
    %v976 = vmul.f32 %v972, %v974
    %978 = vrot.lane.b32.xlu0 %v976, 64
    %v979 = vpop.permute.xlu0 %978
    %v981 = vadd.f32 %v133, %v979
    %v982 = vtanh.pop %v981
    %v984 = vrot.slane %v982, 2
    %v986 = vsub.f32 %v870, %v984
    %v988 = vrot.slane %v986, 6
    %989 = vrot.lane.b32.xlu0 %v988, 96
    %v990 = vpop.permute.xlu0 %989
    %v992 = vmul.f32 %v972, %v990
    %994 = vrot.lane.b32.xlu0 %v992, 32
    %v995 = vpop.permute.xlu0 %994
    %v997 = vadd.f32 %v982, %v995
    %v998 = vadd.f32 %v131, %v962
    %v999 = vxor.u32 %v998, 2147483648
    %v1000 = vmul.f32 %v999, 1.442695
    %v1001 = vpow.pop %v1000
    %v1002 = vadd.f32 %v1001, 1.0
    %v1003 = vrcp.pop %v1002
    %v1004 = vmul.f32 1.0, %v1003
    %1006 = vrot.lane.b32.xlu0 %v962, 64
    %v1007 = vpop.permute.xlu0 %1006
    %v1009 = vmul.f32 %v1004, %v1007
    %1011 = vrot.lane.b32.xlu0 %v1009, 64
    %v1012 = vpop.permute.xlu0 %1011
    %v1014 = vadd.f32 %v131, %v1012
    %v1015 = vtanh.pop %v1014
    %v1017 = vrot.slane %v1015, 6
    %v1019 = vsub.f32 %v905, %v1017
    %v1021 = vrot.slane %v1019, 2
    %1022 = vrot.lane.b32.xlu0 %v1021, 96
    %v1023 = vpop.permute.xlu0 %1022
    %v1025 = vmul.f32 %v1004, %v1023
    %1027 = vrot.lane.b32.xlu0 %v1025, 32
    %v1028 = vpop.permute.xlu0 %1027
    %v1030 = vadd.f32 %v1015, %v1028
    %v1032 = vrot.slane %v997, 4
    %v1034 = vsel %vm286, %v1032, %v1030
    %v1035 = vpack.c.bf16 %v1034, %v1034
    %1037 = vrot.lane.b32.xlu0 %v1035, 64
    %v1038 = vpop.permute.xlu0 %1037
    %v1040 = vsel %vm176, %v1038, 0
    %1042 = vmatprep.subr.bf16.mxu0 %v169
    %1043 = vmatpush1.bf16.msra.mxu0 %v168
    %1044 = vmatprep.subr.bf16.mxu0 %v171
    %1045 = vmatpush1.bf16.msra.mxu0 %v170
    %1046 = vmatprep.subr.bf16.mxu0 0
    %1047 = vmatpush1.bf16.msra.mxu0 0
    %1048 = vmatprep.subr.bf16.mxu0 0
    %1049 = vmatpush1.bf16.msra.mxu0 0
    %1050 = vmatprep.subr.bf16.mxu0 0
    %1051 = vmatpush1.bf16.msra.mxu0 0
    %1052 = vmatprep.subr.bf16.mxu0 0
    %1053 = vmatpush1.bf16.msra.mxu0 0
    %1054 = vmatprep.subr.bf16.mxu0 0
    %1055 = vmatpush1.bf16.msra.mxu0 0
    %1056 = vmatprep.subr.bf16.mxu0 0
    %1057 = vmatpush1.bf16.msra.mxu0 0
    %1058 = vmatprep.subr.bf16.mxu0 0
    %1059 = vmatpush1.bf16.msra.mxu0 0
    %1060 = vmatprep.subr.bf16.mxu0 0
    %1061 = vmatpush1.bf16.msra.mxu0 0
    %1062 = vmatprep.subr.bf16.mxu0 0
    %1063 = vmatpush1.bf16.msra.mxu0 0
    %1064 = vmatprep.subr.bf16.mxu0 0
    %1065 = vmatpush1.bf16.msra.mxu0 0
    %1066 = vmatprep.subr.bf16.mxu0 0
    %1067 = vmatpush1.bf16.msra.mxu0 0
    %1068 = vmatprep.subr.bf16.mxu0 0
    %1069 = vmatpush1.bf16.msra.mxu0 0
    %1070 = vmatprep.subr.bf16.mxu0 0
    %1071 = vmatpush1.bf16.msra.mxu0 0
    %1072 = vmatprep.subr.bf16.mxu0 0
    %1073 = vmatpush1.bf16.msra.mxu0 0
    %1074 = vmatprep.mubr.bf16.mxu0 0
    %1075 = vmatmul.mubr.bf16.gmra.mrb[0].mxu0 %v1040
    %v1076 = vpop.f32.mrb[0].mxu0
    %v1077 = vadd.f32 0.0, %v1076
    %v1078 = vpop.f32.mrb[0].mxu0
    %v1079 = vpop.f32.mrb[0].mxu0
    %v1080 = vpop.f32.mrb[0].mxu0
    %1081 = vdwg.mxu0
    %v1082 = vadd.f32 %v1077, %v146
    %v1084 = vrot.slane %v1082, 2
    %v1086 = vadd.f32 %v133, %v1084
    %v1087 = vxor.u32 %v1086, 2147483648
    %v1088 = vmul.f32 %v1087, 1.442695
    %v1089 = vpow.pop %v1088
    %v1090 = vadd.f32 %v1089, 1.0
    %v1091 = vrcp.pop %v1090
    %v1092 = vmul.f32 1.0, %v1091
    %1093 = vrot.lane.b32.xlu0 %v1084, 64
    %v1094 = vpop.permute.xlu0 %1093
    %v1096 = vmul.f32 %v1092, %v1094
    %1098 = vrot.lane.b32.xlu0 %v1096, 64
    %v1099 = vpop.permute.xlu0 %1098
    %v1101 = vadd.f32 %v133, %v1099
    %v1102 = vtanh.pop %v1101
    %v1104 = vrot.slane %v1102, 2
    %v1106 = vsub.f32 %v997, %v1104
    %v1108 = vrot.slane %v1106, 6
    %1109 = vrot.lane.b32.xlu0 %v1108, 96
    %v1110 = vpop.permute.xlu0 %1109
    %v1112 = vmul.f32 %v1092, %v1110
    %1114 = vrot.lane.b32.xlu0 %v1112, 32
    %v1115 = vpop.permute.xlu0 %1114
    %v1117 = vadd.f32 %v1102, %v1115
    %1119 = vrot.lane.b32.xlu0 %v1117, 64
    %v1120 = vpop.permute.xlu0 %1119
    %1122 = vrot.lane.b32.xlu0 %v282, 96
    %v1123 = vpop.permute.xlu0 %1122
    %v1125 = vsel %vm176, %v1120, %v1123
    %s1126 = sld [smem:[#allocation2]]
    %v1127 = vstv %s1126
    %v1128 = vmul.f32 %v1125, %v1127
    %s1129 = sld [smem:[#allocation2 + $0x1]]
    %v1130 = vstv %s1129
    %v1131 = vadd.f32 %v1128, %v1130
    %v1132 = vmul.f32 %v1131, 0.5
    %v1133 = vmul.f32 %v1131, 0.044715
    %v1134 = vmul.f32 %v1133, %v1131
    %v1135 = vmul.f32 %v1134, %v1131
    %v1136 = vadd.f32 %v1131, %v1135
    %v1137 = vmul.f32 %v1136, 0.7978846
    %v1138 = vtanh.pop %v1137
    %v1139 = vadd.f32 %v1138, 1.0
    %v1140 = vmul.f32 %v1132, %v1139
    %1142 = vrot.lane.b32.xlu0 %v1125, 64
    %v1143 = vpop.permute.xlu0 %1142
    %vm1145 = vcmask 523264
    %v1146 = vsel %vm1145, %v1140, %v1143
    %v1147 = vpack.c.bf16 %v1146, %v1146
    %v1148 = vld [vmem:[%s7] sm:$0xf]
    %v1149 = vld [vmem:[%s7 + $0x4] sm:$0xf]
    %v1150 = vld [vmem:[%s7 + $0x8] sm:$0xf]
    %v1151 = vld [vmem:[%s7 + $0xc] sm:$0xf]
    %v1152 = vld [vmem:[%s7 + $0x10] sm:$0xf]
    %v1153 = vld [vmem:[%s7 + $0x14] sm:$0xf]
    %v1154 = vld [vmem:[%s7 + $0x18] sm:$0xf]
    %v1155 = vld [vmem:[%s7 + $0x1c] sm:$0xf]
    %v1156 = vld [vmem:[%s7 + $0x20] sm:$0xf]
    %v1157 = vld [vmem:[%s7 + $0x24] sm:$0xf]
    %v1158 = vld [vmem:[%s7 + $0x28] sm:$0xf]
    %v1159 = vld [vmem:[%s7 + $0x2c] sm:$0xf]
    %v1160 = vld [vmem:[%s7 + $0x30] sm:$0xf]
    %v1161 = vld [vmem:[%s7 + $0x34] sm:$0xf]
    %v1162 = vld [vmem:[%s7 + $0x38] sm:$0xf]
    %v1163 = vld [vmem:[%s7 + $0x3c] sm:$0xf]
    %v1164 = vld [vmem:[%s9] sm:$0x1]
    %v1166 = vlaneseq
    %v1167 = vshrl.u32 %v1166, 7
    %v1168 = vsub.s32 0, %v1167
    %v1169 = vrot.slane %v1164, %v1168
    %v1172 = vrot.slane %v1147, 3
    %v1190 = vunpack.c.l.b16 %v1148
    %v1191 = vunpack.c.l.b16 %v1149
    %v1192 = vunpack.c.l.b16 %v1150
    %v1193 = vunpack.c.l.b16 %v1151
    %v1194 = vunpack.c.l.b16 %v1152
    %v1195 = vunpack.c.l.b16 %v1153
    %v1196 = vunpack.c.l.b16 %v1154
    %v1197 = vunpack.c.l.b16 %v1155
    %v1198 = vunpack.c.l.b16 %v1156
    %v1199 = vunpack.c.l.b16 %v1157
    %v1200 = vunpack.c.l.b16 %v1158
    %v1201 = vunpack.c.l.b16 %v1159
    %v1202 = vunpack.c.l.b16 %v1160
    %v1203 = vunpack.c.l.b16 %v1161
    %v1204 = vunpack.c.l.b16 %v1162
    %v1205 = vunpack.c.l.b16 %v1163
    %v1206 = vpack.c.b16 %v1191, %v1190
    %v1207 = vpack.c.b16 %v1193, %v1192
    %v1208 = vpack.c.b16 %v1195, %v1194
    %v1209 = vpack.c.b16 %v1197, %v1196
    %v1210 = vpack.c.b16 %v1199, %v1198
    %v1211 = vpack.c.b16 %v1201, %v1200
    %v1212 = vpack.c.b16 %v1203, %v1202
    %v1213 = vpack.c.b16 %v1205, %v1204
    %1222 = vmatprep.subr.bf16.mxu0 0
    %1223 = vmatpush1.bf16.msra.mxu0 %v1206
    %1224 = vmatprep.subr.bf16.mxu0 0
    %1225 = vmatpush1.bf16.msra.mxu0 %v1207
    %1226 = vmatprep.subr.bf16.mxu0 0
    %1227 = vmatpush1.bf16.msra.mxu0 %v1208
    %1228 = vmatprep.subr.bf16.mxu0 0
    %1229 = vmatpush1.bf16.msra.mxu0 %v1209
    %1230 = vmatprep.subr.bf16.mxu0 0
    %1231 = vmatpush1.bf16.msra.mxu0 %v1210
    %1232 = vmatprep.subr.bf16.mxu0 0
    %1233 = vmatpush1.bf16.msra.mxu0 %v1211
    %1234 = vmatprep.subr.bf16.mxu0 0
    %1235 = vmatpush1.bf16.msra.mxu0 %v1212
    %1236 = vmatprep.subr.bf16.mxu0 0
    %1237 = vmatpush1.bf16.msra.mxu0 %v1213
    %1238 = vmatprep.subr.bf16.mxu0 0
    %1239 = vmatpush1.bf16.msra.mxu0 0
    %1240 = vmatprep.subr.bf16.mxu0 0
    %1241 = vmatpush1.bf16.msra.mxu0 0
    %1242 = vmatprep.subr.bf16.mxu0 0
    %1243 = vmatpush1.bf16.msra.mxu0 0
    %1244 = vmatprep.subr.bf16.mxu0 0
    %1245 = vmatpush1.bf16.msra.mxu0 0
    %1246 = vmatprep.subr.bf16.mxu0 0
    %1247 = vmatpush1.bf16.msra.mxu0 0
    %1248 = vmatprep.subr.bf16.mxu0 0
    %1249 = vmatpush1.bf16.msra.mxu0 0
    %1250 = vmatprep.subr.bf16.mxu0 0
    %1251 = vmatpush1.bf16.msra.mxu0 0
    %1252 = vmatprep.subr.bf16.mxu0 0
    %1253 = vmatpush1.bf16.msra.mxu0 0
    %1254 = vmatprep.mubr.bf16.mxu0 0
    %1255 = vmatmul.mubr.bf16.gmra.mrb[0].mxu0 %v1172
    %v1256 = vpop.f32.mrb[0].mxu0
    %v1257 = vadd.f32 %v1169, %v1256
    %v1258 = vpop.f32.mrb[0].mxu0
    %v1259 = vpop.f32.mrb[0].mxu0
    %v1260 = vpop.f32.mrb[0].mxu0
    %1261 = vdwg.mxu0
    %v1262 = vmul.f32 %v1257, 0.5
    %v1263 = vmul.f32 %v1257, 0.044715
    %v1264 = vmul.f32 %v1263, %v1257
    %v1265 = vmul.f32 %v1264, %v1257
    %v1266 = vadd.f32 %v1257, %v1265
    %v1267 = vmul.f32 %v1266, 0.7978846
    %v1268 = vtanh.pop %v1267
    %v1269 = vadd.f32 %v1268, 1.0
    %v1270 = vmul.f32 %v1262, %v1269
    %v1271 = vpack.c.bf16 %v1270, %v1270
    %v1272 = vld [vmem:[%s8] sm:$0xf]
    %v1273 = vld [vmem:[%s8 + $0x4] sm:$0xf]
    %v1274 = vld [vmem:[%s8 + $0x8] sm:$0xf]
    %v1275 = vld [vmem:[%s8 + $0xc] sm:$0xf]
    %v1276 = vld [vmem:[%s8 + $0x10] sm:$0xf]
    %v1277 = vld [vmem:[%s8 + $0x14] sm:$0xf]
    %v1278 = vld [vmem:[%s8 + $0x18] sm:$0xf]
    %v1279 = vld [vmem:[%s8 + $0x1c] sm:$0xf]
    %v1280 = vld [vmem:[%s8 + $0x20] sm:$0xf]
    %v1281 = vld [vmem:[%s8 + $0x24] sm:$0xf]
    %v1282 = vld [vmem:[%s8 + $0x28] sm:$0xf]
    %v1283 = vld [vmem:[%s8 + $0x2c] sm:$0xf]
    %v1284 = vld [vmem:[%s8 + $0x30] sm:$0xf]
    %v1285 = vld [vmem:[%s8 + $0x34] sm:$0xf]
    %v1286 = vld [vmem:[%s8 + $0x38] sm:$0xf]
    %v1287 = vld [vmem:[%s8 + $0x3c] sm:$0xf]
    %v1288 = vld [vmem:[%s10] sm:$0x1]
    %v1290 = vlaneseq
    %v1291 = vshrl.u32 %v1290, 7
    %v1292 = vsub.s32 0, %v1291
    %v1293 = vrot.slane %v1288, %v1292
    %v1311 = vunpack.c.l.b16 %v1272
    %v1312 = vunpack.c.l.b16 %v1273
    %v1313 = vunpack.c.l.b16 %v1274
    %v1314 = vunpack.c.l.b16 %v1275
    %v1315 = vunpack.c.l.b16 %v1276
    %v1316 = vunpack.c.l.b16 %v1277
    %v1317 = vunpack.c.l.b16 %v1278
    %v1318 = vunpack.c.l.b16 %v1279
    %v1319 = vunpack.c.l.b16 %v1280
    %v1320 = vunpack.c.l.b16 %v1281
    %v1321 = vunpack.c.l.b16 %v1282
    %v1322 = vunpack.c.l.b16 %v1283
    %v1323 = vunpack.c.l.b16 %v1284
    %v1324 = vunpack.c.l.b16 %v1285
    %v1325 = vunpack.c.l.b16 %v1286
    %v1326 = vunpack.c.l.b16 %v1287
    %v1327 = vpack.c.b16 %v1312, %v1311
    %v1328 = vpack.c.b16 %v1314, %v1313
    %v1329 = vpack.c.b16 %v1316, %v1315
    %v1330 = vpack.c.b16 %v1318, %v1317
    %v1331 = vpack.c.b16 %v1320, %v1319
    %v1332 = vpack.c.b16 %v1322, %v1321
    %v1333 = vpack.c.b16 %v1324, %v1323
    %v1334 = vpack.c.b16 %v1326, %v1325
    %1343 = vmatprep.subr.bf16.mxu0 0
    %1344 = vmatpush1.bf16.msra.mxu0 %v1327
    %1345 = vmatprep.subr.bf16.mxu0 0
    %1346 = vmatpush1.bf16.msra.mxu0 %v1328
    %1347 = vmatprep.subr.bf16.mxu0 0
    %1348 = vmatpush1.bf16.msra.mxu0 %v1329
    %1349 = vmatprep.subr.bf16.mxu0 0
    %1350 = vmatpush1.bf16.msra.mxu0 %v1330
    %1351 = vmatprep.subr.bf16.mxu0 0
    %1352 = vmatpush1.bf16.msra.mxu0 %v1331
    %1353 = vmatprep.subr.bf16.mxu0 0
    %1354 = vmatpush1.bf16.msra.mxu0 %v1332
    %1355 = vmatprep.subr.bf16.mxu0 0
    %1356 = vmatpush1.bf16.msra.mxu0 %v1333
    %1357 = vmatprep.subr.bf16.mxu0 0
    %1358 = vmatpush1.bf16.msra.mxu0 %v1334
    %1359 = vmatprep.subr.bf16.mxu0 0
    %1360 = vmatpush1.bf16.msra.mxu0 0
    %1361 = vmatprep.subr.bf16.mxu0 0
    %1362 = vmatpush1.bf16.msra.mxu0 0
    %1363 = vmatprep.subr.bf16.mxu0 0
    %1364 = vmatpush1.bf16.msra.mxu0 0
    %1365 = vmatprep.subr.bf16.mxu0 0
    %1366 = vmatpush1.bf16.msra.mxu0 0
    %1367 = vmatprep.subr.bf16.mxu0 0
    %1368 = vmatpush1.bf16.msra.mxu0 0
    %1369 = vmatprep.subr.bf16.mxu0 0
    %1370 = vmatpush1.bf16.msra.mxu0 0
    %1371 = vmatprep.subr.bf16.mxu0 0
    %1372 = vmatpush1.bf16.msra.mxu0 0
    %1373 = vmatprep.subr.bf16.mxu0 0
    %1374 = vmatpush1.bf16.msra.mxu0 0
    %1375 = vmatprep.mubr.bf16.mxu0 0
    %1376 = vmatmul.mubr.bf16.gmra.mrb[0].mxu0 %v1271
    %v1377 = vpop.f32.mrb[0].mxu0
    %v1378 = vadd.f32 %v1293, %v1377
    %v1379 = vpop.f32.mrb[0].mxu0
    %v1380 = vpop.f32.mrb[0].mxu0
    %v1381 = vpop.f32.mrb[0].mxu0
    %1382 = vdwg.mxu0
    %v1383 = vmul.f32 %v1378, 0.5
    %v1384 = vmul.f32 %v1378, 0.044715
    %v1385 = vmul.f32 %v1384, %v1378
    %v1386 = vmul.f32 %v1385, %v1378
    %v1387 = vadd.f32 %v1378, %v1386
    %v1388 = vmul.f32 %v1387, 0.7978846
    %v1389 = vtanh.pop %v1388
    %v1390 = vadd.f32 %v1389, 1.0
    %v1391 = vmul.f32 %v1383, %v1390
    %s1392 = sld [smem:[#allocation2 + $0x2]]
    %v1393 = vstv %s1392
    %v1394 = vmul.f32 %v1391, %v1393
    %s1395 = sld [smem:[#allocation2 + $0x3]]
    %v1396 = vstv %s1395
    %v1397 = vadd.f32 %v1394, %v1396
    %1399 = vrot.lane.b32.xlu0 %v1397, 64
    %v1400 = vpop.permute.xlu0 %1399
    %v1402 = vadd.f32 %v1378, %v1400
    %v1403 = vrot.slane %v1125, 6
    %v1405 = vadd.f32 %v1402, %v1403
    %v1406 = vpack.c.bf16 %v1405, %v1405
    %v1407 = vld [vmem:[%s11] sm:$0xf]
    %v1408 = vld [vmem:[%s11 + $0x4] sm:$0xf]
    %v1409 = vld [vmem:[%s11 + $0x8] sm:$0xf]
    %v1410 = vld [vmem:[%s11 + $0xc] sm:$0xf]
    %v1411 = vld [vmem:[%s11 + $0x10] sm:$0xf]
    %v1412 = vld [vmem:[%s11 + $0x14] sm:$0xf]
    %v1413 = vld [vmem:[%s11 + $0x18] sm:$0xf]
    %v1414 = vld [vmem:[%s11 + $0x1c] sm:$0xf]
    %v1415 = vld [vmem:[%s12] sm:$0x1]
    %v1417 = vlaneseq
    %v1418 = vshrl.u32 %v1417, 7
    %v1419 = vsub.s32 0, %v1418
    %v1420 = vrot.slane %v1415, %v1419
    %v1430 = vunpack.c.l.b16 %v1407
    %v1431 = vunpack.c.l.b16 %v1408
    %v1432 = vunpack.c.l.b16 %v1409
    %v1433 = vunpack.c.l.b16 %v1410
    %v1434 = vunpack.c.l.b16 %v1411
    %v1435 = vunpack.c.l.b16 %v1412
    %v1436 = vunpack.c.l.b16 %v1413
    %v1437 = vunpack.c.l.b16 %v1414
    %v1438 = vpack.c.b16 %v1431, %v1430
    %v1439 = vpack.c.b16 %v1433, %v1432
    %v1440 = vpack.c.b16 %v1435, %v1434
    %v1441 = vpack.c.b16 %v1437, %v1436
    %v1447 = vsel %vm1145, %v1406, 0
    %1449 = vmatprep.subr.bf16.mxu0 0
    %1450 = vmatpush1.bf16.msra.mxu0 %v1438
    %1451 = vmatprep.subr.bf16.mxu0 0
    %1452 = vmatpush1.bf16.msra.mxu0 %v1439
    %1453 = vmatprep.subr.bf16.mxu0 0
    %1454 = vmatpush1.bf16.msra.mxu0 %v1440
    %1455 = vmatprep.subr.bf16.mxu0 0
    %1456 = vmatpush1.bf16.msra.mxu0 %v1441
    %1457 = vmatprep.subr.bf16.mxu0 0
    %1458 = vmatpush1.bf16.msra.mxu0 0
    %1459 = vmatprep.subr.bf16.mxu0 0
    %1460 = vmatpush1.bf16.msra.mxu0 0
    %1461 = vmatprep.subr.bf16.mxu0 0
    %1462 = vmatpush1.bf16.msra.mxu0 0
    %1463 = vmatprep.subr.bf16.mxu0 0
    %1464 = vmatpush1.bf16.msra.mxu0 0
    %1465 = vmatprep.subr.bf16.mxu0 0
    %1466 = vmatpush1.bf16.msra.mxu0 0
    %1467 = vmatprep.subr.bf16.mxu0 0
    %1468 = vmatpush1.bf16.msra.mxu0 0
    %1469 = vmatprep.subr.bf16.mxu0 0
    %1470 = vmatpush1.bf16.msra.mxu0 0
    %1471 = vmatprep.subr.bf16.mxu0 0
    %1472 = vmatpush1.bf16.msra.mxu0 0
    %1473 = vmatprep.subr.bf16.mxu0 0
    %1474 = vmatpush1.bf16.msra.mxu0 0
    %1475 = vmatprep.subr.bf16.mxu0 0
    %1476 = vmatpush1.bf16.msra.mxu0 0
    %1477 = vmatprep.subr.bf16.mxu0 0
    %1478 = vmatpush1.bf16.msra.mxu0 0
    %1479 = vmatprep.subr.bf16.mxu0 0
    %1480 = vmatpush1.bf16.msra.mxu0 0
    %1481 = vmatprep.mubr.bf16.mxu0 0
    %1482 = vmatmul.mubr.bf16.gmra.mrb[0].mxu0 %v1447
    %v1483 = vpop.f32.mrb[0].mxu0
    %v1484 = vadd.f32 %v1420, %v1483
    %v1485 = vpop.f32.mrb[0].mxu0
    %v1486 = vpop.f32.mrb[0].mxu0
    %v1487 = vpop.f32.mrb[0].mxu0
    %1488 = vdwg.mxu0
    %1489 = vst [vmem:[#allocation5] sm:$0x3] %v1484
    // Predicated region
    $region58: #{model_forward.1} parent=1 // pred_check
      _
    $region59: #{model_forward.1} parent=1 // pred_check_branch
      %1491 = sbr.rel (0) target = $region61
    $region60: #{model_forward.1} parent=1 // pred_region
      %s1493 = ssub.s32 32, 32
      %1494 = vsyncadd [#allocation3], %s1493
      %s1496 = sshll.u32 [#allocation5], 4
      %s1497 = int_to_ptr.vmem [resolvable:$true] %s1496
      %1499 = dma.vmem_to_hbm [thread:$0]  %s1497, 32, %s13, [#allocation3]
    $region61: #{model_forward.1} parent=1 // pred_fallthru
      _
    // Predicated region
    $region62: #{model_forward.1} parent=1 // pred_check
      _
    $region63: #{model_forward.1} parent=1 // pred_check_branch
      %1501 = sbr.rel (0) target = $region65
    $region64: #{model_forward.1} parent=1 // pred_region
      %1502 = dma.done [#allocation3], 32
    $region65: #{model_forward.1} parent=1 // pred_fallthru
      _
    %1503 = vsyncpa [#allocation3], 1
    %1504 = vsyncpa [#allocation4], 1

</llo_original>
